<compile_context>
chip_gen: v7x
topology: tpu7x:2x2x1
jax: 0.10.0
libtpu: 0.0.40
codegen_flags: <defaults>
</compile_context>

<pallas_src>
import functools

import jax
import jax.numpy as jnp
from jax.experimental import pallas as pl
from jax.experimental.pallas import tpu as pltpu


# -----------------------------------------------------------------------------
# Kernel
# -----------------------------------------------------------------------------
def classifier_kernel(x_ref, w1_ref, gamma_ref, beta_ref, w2_ref, b2_ref,
                      f_ref, y_ref, *, multi_step, batch):
    # --- addBlock Linear (bias omitted: cancels under batch-stat BN) ---------
    # x_ref: (B, K) bf16 (resident), w1_ref: (K, tf) bf16 tile -> h: (B, tf) f32.
    h = jnp.dot(x_ref[...], w1_ref[...], preferred_element_type=jnp.float32)

    # --- BatchNorm1d (training-mode batch stats, biased var, eps=1e-5) -------
    # Folded into a single per-feature scale/bias -> one fused pass over (B, tf).
    inv_n = 1.0 / batch
    mean = jnp.sum(h, axis=0, keepdims=True) * inv_n
    var = jnp.sum(h * h, axis=0, keepdims=True) * inv_n - mean * mean
    scale = gamma_ref[...] * jax.lax.rsqrt(var + 1e-5)      # rsqrt -> EUP slot
    bias = beta_ref[...] - mean * scale
    hn = h * scale + bias

    # --- LeakyReLU(0.1) as a single max; Dropout(p=0.5) = identity (eval) ----
    f = jnp.maximum(hn, 0.1 * hn)
    f_ref[...] = f.astype(f_ref.dtype)

    # --- classifier Linear: accumulate directly into the resident f32 y_ref --
    part = jnp.dot(f.astype(w2_ref.dtype), w2_ref[...],
                   preferred_element_type=jnp.float32)
    if multi_step:
        @pl.when(pl.program_id(0) == 0)
        def _():
            y_ref[...] = jnp.broadcast_to(b2_ref[...], y_ref.shape)

        y_ref[...] += part
    else:
        y_ref[...] = part + b2_ref[...]


# -----------------------------------------------------------------------------
# VMEM-aware tiling helpers
# -----------------------------------------------------------------------------
def _vmem_budget_bytes():
    """Generation-dependent VMEM budget with ~25% headroom for compiler scratch."""
    try:
        cap = pltpu.get_tpu_info().vmem_capacity_bytes   # 128 MiB v5e/v6e, 64 MiB v7x
    except Exception:
        cap = 64 * 1024 * 1024
    return (cap * 3) // 4


def _working_set_bytes(B, inputDim, tf, NPAD, n_buf, mm_itemsize):
    return (B * inputDim * mm_itemsize            # x (grid-invariant, single buffer)
            + n_buf * inputDim * tf * mm_itemsize  # w1^T column tile(s)
            + n_buf * 2 * tf * 4                   # gamma / beta tiles (f32)
            + n_buf * tf * NPAD * mm_itemsize      # w2^T row tile(s)
            + NPAD * 4                             # b2 (f32, resident)
            + n_buf * B * tf * 4                   # f tile(s) (f32)
            + B * NPAD * 4)                        # y (f32, resident accumulator)


def _pick_feature_tile(B, inputDim, nBottleneck, NPAD, mm_itemsize):
    budget = _vmem_budget_bytes()
    # Prefer a single step (tf = nBottleneck): no accumulation, no per-step overhead.
    if _working_set_bytes(B, inputDim, nBottleneck, NPAD, 1, mm_itemsize) <= budget:
        return nBottleneck, budget
    # Otherwise the largest 128-multiple divisor whose double-buffered set fits.
    start = (nBottleneck // 128) * 128
    for cand in range(start, 0, -128):
        if nBottleneck % cand == 0 and \
           _working_set_bytes(B, inputDim, cand, NPAD, 2, mm_itemsize) <= budget:
            return cand, budget
    # Fallback (tiny or awkward nBottleneck).
    return (128 if nBottleneck % 128 == 0 else nBottleneck), budget


# -----------------------------------------------------------------------------
# Wrapper
# -----------------------------------------------------------------------------
@functools.partial(jax.jit, static_argnames=("matmul_dtype",))
def classifier_forward(x, w1, b1, gamma, beta, w2, b2,
                       matmul_dtype=jnp.bfloat16):
    B, inputDim = x.shape
    nBottleneck = w1.shape[0]
    nClass = w2.shape[0]

    # b1 intentionally unused: a constant per-feature bias cancels exactly in the
    # batch-statistic BatchNorm that follows (and is 0 under weightsInitKaiming).
    del b1

    mm_itemsize = jnp.dtype(matmul_dtype).itemsize
    NPAD = max(128, ((nClass + 127) // 128) * 128)           # lane-dense classifier out
    tf, budget = _pick_feature_tile(B, inputDim, nBottleneck, NPAD, mm_itemsize)
    n_ft = nBottleneck // tf
    multi_step = n_ft > 1

    ws_bytes = _working_set_bytes(B, inputDim, tf, NPAD,
                                  2 if multi_step else 1, mm_itemsize)
    vmem_limit = int(min(budget, max(ws_bytes * 5 // 4 + (2 << 20), 16 << 20)))

    # ---- wrapper-side layout plumbing (done once, outside the kernel) ----
    x_mm = x.astype(matmul_dtype)                                     # (B, K)
    w1t = jnp.transpose(w1).astype(matmul_dtype)                      # (K, nBottleneck)
    w2t = jnp.zeros((nBottleneck, NPAD), matmul_dtype)                # (nBottleneck, NPAD)
    w2t = w2t.at[:, :nClass].set(jnp.transpose(w2).astype(matmul_dtype))
    b2p = jnp.zeros((1, NPAD), jnp.float32)
    b2p = b2p.at[:, :nClass].set(b2.reshape(1, nClass).astype(jnp.float32))
    gamma2 = gamma.reshape(1, nBottleneck).astype(jnp.float32)
    beta2 = beta.reshape(1, nBottleneck).astype(jnp.float32)

    bytes_in = (B * inputDim * mm_itemsize
                + inputDim * nBottleneck * mm_itemsize
                + nBottleneck * NPAD * mm_itemsize
                + (2 * nBottleneck + NPAD) * 4)
    bytes_out = B * nBottleneck * 4 + B * NPAD * 4
    cost = pl.CostEstimate(
        flops=2 * B * inputDim * nBottleneck + 2 * B * nBottleneck * NPAD,
        transcendentals=nBottleneck,                  # one rsqrt per feature
        bytes_accessed=bytes_in + bytes_out,
    )

    # Grid-invariant inputs need no double-buffering when the grid has >1 step.
    invariant = dict(pipeline_mode=pl.Buffered(1)) if multi_step else {}

    kernel = functools.partial(classifier_kernel,
                               multi_step=multi_step, batch=float(B))

    f, y_pad = pl.pallas_call(
        kernel,
        out_shape=(
            jax.ShapeDtypeStruct((B, nBottleneck), jnp.float32),
            jax.ShapeDtypeStruct((B, NPAD), jnp.float32),
        ),
        grid_spec=pltpu.PrefetchScalarGridSpec(
            num_scalar_prefetch=0,
            grid=(n_ft,),
            in_specs=[
                pl.BlockSpec((B, inputDim), lambda j: (0, 0), **invariant),  # x
                pl.BlockSpec((inputDim, tf), lambda j: (0, j)),              # w1^T tile
                pl.BlockSpec((1, tf), lambda j: (0, j)),                     # gamma tile
                pl.BlockSpec((1, tf), lambda j: (0, j)),                     # beta tile
                pl.BlockSpec((tf, NPAD), lambda j: (j, 0)),                  # w2^T tile
                pl.BlockSpec((1, NPAD), lambda j: (0, 0), **invariant),      # b2
            ],
            out_specs=(
                pl.BlockSpec((B, tf), lambda j: (0, j)),                     # f tile
                pl.BlockSpec((B, NPAD), lambda j: (0, 0)),                   # y (resident)
            ),
        ),
        compiler_params=pltpu.CompilerParams(
            # feature axis is the reduction axis of the classifier matmul
            dimension_semantics=("arbitrary",),
            vmem_limit_bytes=vmem_limit,
        ),
        cost_estimate=cost,
    )(x_mm, w1t, gamma2, beta2, w2t, b2p)

    return f, y_pad[:, :nClass]


# -----------------------------------------------------------------------------
# Pure-JAX reference (same precision recipe, textbook BN formula)
# -----------------------------------------------------------------------------
def reference_forward(x, w1, b1, gamma, beta, w2, b2, matmul_dtype=jnp.bfloat16):
    del b1  # zero, and cancels under batch-stat BN anyway
    h = jnp.dot(x.astype(matmul_dtype), jnp.transpose(w1).astype(matmul_dtype),
                preferred_element_type=jnp.float32)
    mean = jnp.mean(h, axis=0, keepdims=True)
    var = jnp.mean((h - mean) ** 2, axis=0, keepdims=True)
    hn = gamma * (h - mean) * jax.lax.rsqrt(var + 1e-5) + beta
    f = jnp.where(hn > 0, hn, 0.1 * hn)
    y = jnp.dot(f.astype(matmul_dtype), jnp.transpose(w2).astype(matmul_dtype),
                preferred_element_type=jnp.float32) + b2
    return f, y


def init_params(key, inputDim, nBottleneck, nClass):
    k1, k2, k3 = jax.random.split(key, 3)
    # weightsInitKaiming: Linear -> kaiming_normal_(mode='fan_out'), bias=0
    std_w1 = (2.0 / nBottleneck) ** 0.5
    w1 = std_w1 * jax.random.normal(k1, (nBottleneck, inputDim), jnp.float32)
    b1 = jnp.zeros((1, nBottleneck), jnp.float32)
    # BatchNorm1d -> weight ~ N(1.0, 0.02), bias = 0
    gamma = 1.0 + 0.02 * jax.random.normal(k2, (1, nBottleneck), jnp.float32)
    beta = jnp.zeros((1, nBottleneck), jnp.float32)
    # weightsInitClassifier: Linear -> weight ~ N(0, 0.001), bias = 0
    w2 = 0.001 * jax.random.normal(k3, (nClass, nBottleneck), jnp.float32)
    b2 = jnp.zeros((1, nClass), jnp.float32)
    return w1, b1, gamma, beta, w2, b2


if __name__ == "__main__":
    # Small but MXU-meaningful shapes (nBottleneck matches the module default).
    B, inputDim, nBottleneck, nClass = 128, 256, 512, 10

    key = jax.random.PRNGKey(0)
    kx, kp = jax.random.split(key)
    x = jax.random.normal(kx, (B, inputDim), jnp.float32)
    params = init_params(kp, inputDim, nBottleneck, nClass)

    f, y = classifier_forward(x, *params)
    jax.block_until_ready((f, y))

    assert f.shape == (B, nBottleneck) and y.shape == (B, nClass)
    assert f.dtype == jnp.float32 and y.dtype == jnp.float32

    # Correctness vs. pure-JAX reference using the same precision recipe.
    f_ref, y_ref = reference_forward(x, *params)
    assert bool(jnp.allclose(f, f_ref, rtol=1e-2, atol=1e-3)), "f mismatch"
    assert bool(jnp.allclose(y, y_ref, rtol=1e-2, atol=1e-3)), "y mismatch"

    print("KERNEL_OK")
</pallas_src>

<mosaic_0001>
module attributes {stable_mosaic.version = 11 : i64} {
  func.func @classifier_kernel(%arg0: i32, %arg1: memref<128x256xbf16, #tpu.memory_space<vmem>>, %arg2: memref<256x512xbf16, #tpu.memory_space<vmem>>, %arg3: memref<1x512xf32, #tpu.memory_space<vmem>>, %arg4: memref<1x512xf32, #tpu.memory_space<vmem>>, %arg5: memref<512x128xbf16, #tpu.memory_space<vmem>>, %arg6: memref<1x128xf32, #tpu.memory_space<vmem>>, %arg7: memref<128x512xf32, #tpu.memory_space<vmem>>, %arg8: memref<128x128xf32, #tpu.memory_space<vmem>>) attributes {dimension_semantics = [#tpu.dimension_semantics<arbitrary>], iteration_bounds = array<i64: 1>, scalar_prefetch = 0 : i64, scratch_operands = 0 : i64, tpu.core_type = #tpu.core_type<tc>, window_params = [{pipeline_mode = #tpu.pipeline_mode<synchronous>, transform_indices = @transform_0, window_bounds = array<i64: 128, 256>}, {transform_indices = @transform_1, window_bounds = array<i64: 256, 512>}, {transform_indices = @transform_2, window_bounds = array<i64: 1, 512>}, {transform_indices = @transform_3, window_bounds = array<i64: 1, 512>}, {transform_indices = @transform_4, window_bounds = array<i64: 512, 128>}, {pipeline_mode = #tpu.pipeline_mode<synchronous>, transform_indices = @transform_5, window_bounds = array<i64: 1, 128>}, {transform_indices = @transform_6, window_bounds = array<i64: 128, 512>}, {pipeline_mode = #tpu.pipeline_mode<synchronous>, transform_indices = @transform_7, window_bounds = array<i64: 128, 128>}]} {
    %c0 = arith.constant 0 : index
    %c0_0 = arith.constant 0 : index
    %0 = vector.load %arg1[%c0, %c0_0] : memref<128x256xbf16, #tpu.memory_space<vmem>>, vector<128x256xbf16>
    %c0_1 = arith.constant 0 : index
    %c0_2 = arith.constant 0 : index
    %1 = vector.load %arg2[%c0_1, %c0_2] : memref<256x512xbf16, #tpu.memory_space<vmem>>, vector<256x512xbf16>
    %cst = arith.constant dense<0.000000e+00> : vector<128x512xf32>
    %2 = tpu.matmul %0, %1, %cst {dimension_numbers = #tpu.dot_dimension_numbers<[1], [0], [0], [1], [0, 0, 1, 1], [], []>} : vector<128x256xbf16>, vector<256x512xbf16>, vector<128x512xf32> -> vector<128x512xf32>
    %cst_3 = arith.constant dense<0.000000e+00> : vector<512xf32>
    %3 = vector.multi_reduction <add>, %2, %cst_3 [0] : vector<128x512xf32> to vector<512xf32>
    %4 = vector.shape_cast %3 : vector<512xf32> to vector<1x512xf32>
    %cst_4 = arith.constant 7.812500e-03 : f32
    %5 = vector.broadcast %cst_4 : f32 to vector<1x512xf32>
    %6 = arith.mulf %4, %5 : vector<1x512xf32>
    %7 = arith.mulf %2, %2 : vector<128x512xf32>
    %cst_5 = arith.constant dense<0.000000e+00> : vector<512xf32>
    %8 = vector.multi_reduction <add>, %7, %cst_5 [0] : vector<128x512xf32> to vector<512xf32>
    %9 = vector.shape_cast %8 : vector<512xf32> to vector<1x512xf32>
    %cst_6 = arith.constant 7.812500e-03 : f32
    %10 = vector.broadcast %cst_6 : f32 to vector<1x512xf32>
    %11 = arith.mulf %9, %10 : vector<1x512xf32>
    %12 = arith.mulf %6, %6 : vector<1x512xf32>
    %13 = arith.subf %11, %12 : vector<1x512xf32>
    %c0_7 = arith.constant 0 : index
    %c0_8 = arith.constant 0 : index
    %14 = vector.load %arg3[%c0_7, %c0_8] : memref<1x512xf32, #tpu.memory_space<vmem>>, vector<1x512xf32>
    %cst_9 = arith.constant 9.99999974E-6 : f32
    %15 = vector.broadcast %cst_9 : f32 to vector<1x512xf32>
    %16 = arith.addf %13, %15 : vector<1x512xf32>
    %17 = math.rsqrt %16 : vector<1x512xf32>
    %18 = arith.mulf %14, %17 : vector<1x512xf32>
    %c0_10 = arith.constant 0 : index
    %c0_11 = arith.constant 0 : index
    %19 = vector.load %arg4[%c0_10, %c0_11] : memref<1x512xf32, #tpu.memory_space<vmem>>, vector<1x512xf32>
    %20 = arith.mulf %6, %18 : vector<1x512xf32>
    %21 = arith.subf %19, %20 : vector<1x512xf32>
    %22 = vector.broadcast %18 : vector<1x512xf32> to vector<128x512xf32>
    %23 = arith.mulf %2, %22 : vector<128x512xf32>
    %24 = vector.broadcast %21 : vector<1x512xf32> to vector<128x512xf32>
    %25 = arith.addf %23, %24 : vector<128x512xf32>
    %cst_12 = arith.constant 1.000000e-01 : f32
    %26 = vector.broadcast %cst_12 : f32 to vector<128x512xf32>
    %27 = arith.mulf %26, %25 : vector<128x512xf32>
    %28 = arith.maximumf %25, %27 : vector<128x512xf32>
    %c0_13 = arith.constant 0 : index
    %c0_14 = arith.constant 0 : index
    %29 = vector.load %arg7[%c0_13, %c0_14] : memref<128x512xf32, #tpu.memory_space<vmem>>, vector<128x512xf32>
    tpu.vector_store %arg7[%c0_13, %c0_14], %28 {strides = array<i32>} : memref<128x512xf32, #tpu.memory_space<vmem>>, vector<128x512xf32>,
    %30 = arith.truncf %28 : vector<128x512xf32> to vector<128x512xbf16>
    %c0_15 = arith.constant 0 : index
    %c0_16 = arith.constant 0 : index
    %31 = vector.load %arg5[%c0_15, %c0_16] : memref<512x128xbf16, #tpu.memory_space<vmem>>, vector<512x128xbf16>
    %cst_17 = arith.constant dense<0.000000e+00> : vector<128x128xf32>
    %32 = tpu.matmul %30, %31, %cst_17 {dimension_numbers = #tpu.dot_dimension_numbers<[1], [0], [0], [1], [0, 0, 1, 1], [], []>} : vector<128x512xbf16>, vector<512x128xbf16>, vector<128x128xf32> -> vector<128x128xf32>
    %c0_18 = arith.constant 0 : index
    %c0_19 = arith.constant 0 : index
    %33 = vector.load %arg6[%c0_18, %c0_19] : memref<1x128xf32, #tpu.memory_space<vmem>>, vector<1x128xf32>
    %34 = vector.broadcast %33 : vector<1x128xf32> to vector<128x128xf32>
    %35 = arith.addf %32, %34 : vector<128x128xf32>
    %c0_20 = arith.constant 0 : index
    %c0_21 = arith.constant 0 : index
    %36 = vector.load %arg8[%c0_20, %c0_21] : memref<128x128xf32, #tpu.memory_space<vmem>>, vector<128x128xf32>
    tpu.vector_store %arg8[%c0_20, %c0_21], %35 {strides = array<i32>} : memref<128x128xf32, #tpu.memory_space<vmem>>, vector<128x128xf32>,
    return
  }
  func.func @transform_0(%arg0: i32) -> (i32, i32) {
    %c0_i32 = arith.constant 0 : i32
    %c0_i32_0 = arith.constant 0 : i32
    %c0_i32_1 = arith.constant 0 : i32
    return %c0_i32, %c0_i32_0 : i32, i32
  }
  func.func @transform_1(%arg0: i32) -> (i32, i32) {
    %c0_i32 = arith.constant 0 : i32
    %c0_i32_0 = arith.constant 0 : i32
    return %c0_i32, %arg0 : i32, i32
  }
  func.func @transform_2(%arg0: i32) -> (i32, i32) {
    %c0_i32 = arith.constant 0 : i32
    %c0_i32_0 = arith.constant 0 : i32
    return %c0_i32, %arg0 : i32, i32
  }
  func.func @transform_3(%arg0: i32) -> (i32, i32) {
    %c0_i32 = arith.constant 0 : i32
    %c0_i32_0 = arith.constant 0 : i32
    return %c0_i32, %arg0 : i32, i32
  }
  func.func @transform_4(%arg0: i32) -> (i32, i32) {
    %c0_i32 = arith.constant 0 : i32
    %c0_i32_0 = arith.constant 0 : i32
    return %arg0, %c0_i32 : i32, i32
  }
  func.func @transform_5(%arg0: i32) -> (i32, i32) {
    %c0_i32 = arith.constant 0 : i32
    %c0_i32_0 = arith.constant 0 : i32
    %c0_i32_1 = arith.constant 0 : i32
    return %c0_i32, %c0_i32_0 : i32, i32
  }
  func.func @transform_6(%arg0: i32) -> (i32, i32) {
    %c0_i32 = arith.constant 0 : i32
    %c0_i32_0 = arith.constant 0 : i32
    return %c0_i32, %arg0 : i32, i32
  }
  func.func @transform_7(%arg0: i32) -> (i32, i32) {
    %c0_i32 = arith.constant 0 : i32
    %c0_i32_0 = arith.constant 0 : i32
    %c0_i32_1 = arith.constant 0 : i32
    return %c0_i32, %c0_i32_0 : i32, i32
  }
}

</mosaic_0001>

<llo_original>
// kernel: classifier_forward.1
$region0: #{classifier_forward.1}
  #allocation0 [shape = 'u32[]', space=smem, size = 0x4, offset = 0x4, fixed_abs, tag = 'smem constant byte address 0x4 - core index']
  #allocation1 [shape = 'u32[144,128]{1,0:T(1,128)}', space=vmem, size = 0x12000, scoped, tag = 'internal scratch']
  %s0 = inlined_call_operand.vmem [shape: bf16[128,256], index: 0, kind: input, shape index: {}]
  %s1 = inlined_call_operand.vmem [shape: bf16[256,512], index: 1, kind: input, shape index: {}]
  %s2 = inlined_call_operand.vmem [shape: f32[1,512], index: 2, kind: input, shape index: {}]
  %s3 = inlined_call_operand.vmem [shape: f32[1,512], index: 3, kind: input, shape index: {}]
  %s4 = inlined_call_operand.vmem [shape: bf16[512,128], index: 4, kind: input, shape index: {}]
  %s5 = inlined_call_operand.vmem [shape: f32[1,128], index: 5, kind: input, shape index: {}]
  %s6 = inlined_call_operand.hbm [shape: f32[128,512], index: 6, kind: output, shape index: {0}]
  %s7 = inlined_call_operand.vmem [shape: f32[128,128], index: 7, kind: output, shape index: {1}]
  %8 = xla_tuple %s6, %s7
  %s9 = sld [smem:[#allocation0]]
  $region42: #{classifier_forward.1} parent=0
    _
  %s11 = ssub.s32 1, %s9
  %s12 = scalar_select 0, %s11, %s9
  $region1: #{classifier_forward.1} parent=0
    #allocation2 [shape = 'u8[262144]{0}', space=vmem, size = 0x40000, scoped, tag = 'output window, operand 0, single buffered']
    #allocation3 [shape = 's32[1]{0}', space=sflag, size = 0x4, scoped, tag = 'scoped memory for classifier_forward.1']
    %13 = vsyncpa [#allocation3], 0
    // Predicated region
    $region2: #{classifier_forward.1} parent=1 // pred_check
      _
    $region3: #{classifier_forward.1} parent=1 // pred_check_branch
      %15 = sbr.rel (0) target = $region5
    $region4: #{classifier_forward.1} parent=1 // pred_region
      _
    $region5: #{classifier_forward.1} parent=1 // pred_fallthru
      _
    // Predicated region
    $region6: #{classifier_forward.1} parent=1 // pred_check
      _
    $region7: #{classifier_forward.1} parent=1 // pred_check_branch
      %17 = sbr.rel (0) target = $region9
    $region8: #{classifier_forward.1} parent=1 // pred_region
      _
    $region9: #{classifier_forward.1} parent=1 // pred_fallthru
      _
    // Predicated region
    $region10: #{classifier_forward.1} parent=1 // pred_check
      _
    $region11: #{classifier_forward.1} parent=1 // pred_check_branch
      %19 = sbr.rel (0) target = $region13
    $region12: #{classifier_forward.1} parent=1 // pred_region
      _
    $region13: #{classifier_forward.1} parent=1 // pred_fallthru
      _
    // Predicated region
    $region14: #{classifier_forward.1} parent=1 // pred_check
      _
    $region15: #{classifier_forward.1} parent=1 // pred_check_branch
      %21 = sbr.rel (0) target = $region17
    $region16: #{classifier_forward.1} parent=1 // pred_region
      _
    $region17: #{classifier_forward.1} parent=1 // pred_fallthru
      _
    // Predicated region
    $region18: #{classifier_forward.1} parent=1 // pred_check
      _
    $region19: #{classifier_forward.1} parent=1 // pred_check_branch
      %23 = sbr.rel (0) target = $region21
    $region20: #{classifier_forward.1} parent=1 // pred_region
      _
    $region21: #{classifier_forward.1} parent=1 // pred_fallthru
      _
    // Predicated region
    $region22: #{classifier_forward.1} parent=1 // pred_check
      _
    $region23: #{classifier_forward.1} parent=1 // pred_check_branch
      %25 = sbr.rel (0) target = $region25
    $region24: #{classifier_forward.1} parent=1 // pred_region
      _
    $region25: #{classifier_forward.1} parent=1 // pred_fallthru
      _
    %v27 = vld [vmem:[%s0] sm:$0xff]
    %v28 = vld [vmem:[%s0 + $0x8] sm:$0xff]
    %v29 = vld [vmem:[%s0 + $0x10] sm:$0xff]
    %v30 = vld [vmem:[%s0 + $0x18] sm:$0xff]
    %v31 = vld [vmem:[%s0 + $0x20] sm:$0xff]
    %v32 = vld [vmem:[%s0 + $0x28] sm:$0xff]
    %v33 = vld [vmem:[%s0 + $0x30] sm:$0xff]
    %v34 = vld [vmem:[%s0 + $0x38] sm:$0xff]
    %v35 = vld [vmem:[%s0 + $0x40] sm:$0xff]
    %v36 = vld [vmem:[%s0 + $0x48] sm:$0xff]
    %v37 = vld [vmem:[%s0 + $0x50] sm:$0xff]
    %v38 = vld [vmem:[%s0 + $0x58] sm:$0xff]
    %v39 = vld [vmem:[%s0 + $0x60] sm:$0xff]
    %v40 = vld [vmem:[%s0 + $0x68] sm:$0xff]
    %v41 = vld [vmem:[%s0 + $0x70] sm:$0xff]
    %v42 = vld [vmem:[%s0 + $0x78] sm:$0xff]
    %v43 = vld [vmem:[%s1] sm:$0xff]
    %v44 = vld [vmem:[%s1 + $0x8] sm:$0xff]
    %v45 = vld [vmem:[%s1 + $0x10] sm:$0xff]
    %v46 = vld [vmem:[%s1 + $0x18] sm:$0xff]
    %v47 = vld [vmem:[%s1 + $0x20] sm:$0xff]
    %v48 = vld [vmem:[%s1 + $0x28] sm:$0xff]
    %v49 = vld [vmem:[%s1 + $0x30] sm:$0xff]
    %v50 = vld [vmem:[%s1 + $0x38] sm:$0xff]
    %v51 = vld [vmem:[%s1 + $0x40] sm:$0xff]
    %v52 = vld [vmem:[%s1 + $0x48] sm:$0xff]
    %v53 = vld [vmem:[%s1 + $0x50] sm:$0xff]
    %v54 = vld [vmem:[%s1 + $0x58] sm:$0xff]
    %v55 = vld [vmem:[%s1 + $0x60] sm:$0xff]
    %v56 = vld [vmem:[%s1 + $0x68] sm:$0xff]
    %v57 = vld [vmem:[%s1 + $0x70] sm:$0xff]
    %v58 = vld [vmem:[%s1 + $0x78] sm:$0xff]
    %v59 = vld [vmem:[%s1 + $0x80] sm:$0xff]
    %v60 = vld [vmem:[%s1 + $0x88] sm:$0xff]
    %v61 = vld [vmem:[%s1 + $0x90] sm:$0xff]
    %v62 = vld [vmem:[%s1 + $0x98] sm:$0xff]
    %v63 = vld [vmem:[%s1 + $0xa0] sm:$0xff]
    %v64 = vld [vmem:[%s1 + $0xa8] sm:$0xff]
    %v65 = vld [vmem:[%s1 + $0xb0] sm:$0xff]
    %v66 = vld [vmem:[%s1 + $0xb8] sm:$0xff]
    %v67 = vld [vmem:[%s1 + $0xc0] sm:$0xff]
    %v68 = vld [vmem:[%s1 + $0xc8] sm:$0xff]
    %v69 = vld [vmem:[%s1 + $0xd0] sm:$0xff]
    %v70 = vld [vmem:[%s1 + $0xd8] sm:$0xff]
    %v71 = vld [vmem:[%s1 + $0xe0] sm:$0xff]
    %v72 = vld [vmem:[%s1 + $0xe8] sm:$0xff]
    %v73 = vld [vmem:[%s1 + $0xf0] sm:$0xff]
    %v74 = vld [vmem:[%s1 + $0xf8] sm:$0xff]
    %v75 = vld [vmem:[%s1 + $0x100] sm:$0xff]
    %v76 = vld [vmem:[%s1 + $0x108] sm:$0xff]
    %v77 = vld [vmem:[%s1 + $0x110] sm:$0xff]
    %v78 = vld [vmem:[%s1 + $0x118] sm:$0xff]
    %v79 = vld [vmem:[%s1 + $0x120] sm:$0xff]
    %v80 = vld [vmem:[%s1 + $0x128] sm:$0xff]
    %v81 = vld [vmem:[%s1 + $0x130] sm:$0xff]
    %v82 = vld [vmem:[%s1 + $0x138] sm:$0xff]
    %v83 = vld [vmem:[%s1 + $0x140] sm:$0xff]
    %v84 = vld [vmem:[%s1 + $0x148] sm:$0xff]
    %v85 = vld [vmem:[%s1 + $0x150] sm:$0xff]
    %v86 = vld [vmem:[%s1 + $0x158] sm:$0xff]
    %v87 = vld [vmem:[%s1 + $0x160] sm:$0xff]
    %v88 = vld [vmem:[%s1 + $0x168] sm:$0xff]
    %v89 = vld [vmem:[%s1 + $0x170] sm:$0xff]
    %v90 = vld [vmem:[%s1 + $0x178] sm:$0xff]
    %v91 = vld [vmem:[%s1 + $0x180] sm:$0xff]
    %v92 = vld [vmem:[%s1 + $0x188] sm:$0xff]
    %v93 = vld [vmem:[%s1 + $0x190] sm:$0xff]
    %v94 = vld [vmem:[%s1 + $0x198] sm:$0xff]
    %v95 = vld [vmem:[%s1 + $0x1a0] sm:$0xff]
    %v96 = vld [vmem:[%s1 + $0x1a8] sm:$0xff]
    %v97 = vld [vmem:[%s1 + $0x1b0] sm:$0xff]
    %v98 = vld [vmem:[%s1 + $0x1b8] sm:$0xff]
    %v99 = vld [vmem:[%s1 + $0x1c0] sm:$0xff]
    %v100 = vld [vmem:[%s1 + $0x1c8] sm:$0xff]
    %v101 = vld [vmem:[%s1 + $0x1d0] sm:$0xff]
    %v102 = vld [vmem:[%s1 + $0x1d8] sm:$0xff]
    %v103 = vld [vmem:[%s1 + $0x1e0] sm:$0xff]
    %v104 = vld [vmem:[%s1 + $0x1e8] sm:$0xff]
    %v105 = vld [vmem:[%s1 + $0x1f0] sm:$0xff]
    %v106 = vld [vmem:[%s1 + $0x1f8] sm:$0xff]
    %v123 = vunpack.c.l.b16 %v27
    %v124 = vunpack.c.h.b16 %v27
    %v125 = vunpack.c.l.b16 %v28
    %v126 = vunpack.c.h.b16 %v28
    %v127 = vunpack.c.l.b16 %v29
    %v128 = vunpack.c.h.b16 %v29
    %v129 = vunpack.c.l.b16 %v30
    %v130 = vunpack.c.h.b16 %v30
    %v131 = vunpack.c.l.b16 %v31
    %v132 = vunpack.c.h.b16 %v31
    %v133 = vunpack.c.l.b16 %v32
    %v134 = vunpack.c.h.b16 %v32
    %v135 = vunpack.c.l.b16 %v33
    %v136 = vunpack.c.h.b16 %v33
    %v137 = vunpack.c.l.b16 %v34
    %v138 = vunpack.c.h.b16 %v34
    %v139 = vunpack.c.l.b16 %v35
    %v140 = vunpack.c.h.b16 %v35
    %v141 = vunpack.c.l.b16 %v36
    %v142 = vunpack.c.h.b16 %v36
    %v143 = vunpack.c.l.b16 %v37
    %v144 = vunpack.c.h.b16 %v37
    %v145 = vunpack.c.l.b16 %v38
    %v146 = vunpack.c.h.b16 %v38
    %v147 = vunpack.c.l.b16 %v39
    %v148 = vunpack.c.h.b16 %v39
    %v149 = vunpack.c.l.b16 %v40
    %v150 = vunpack.c.h.b16 %v40
    %v151 = vunpack.c.l.b16 %v41
    %v152 = vunpack.c.h.b16 %v41
    %v153 = vunpack.c.l.b16 %v42
    %v154 = vunpack.c.h.b16 %v42
    %v155 = vpack.c.b16 %v125, %v123
    %v156 = vpack.c.b16 %v126, %v124
    %v157 = vpack.c.b16 %v129, %v127
    %v158 = vpack.c.b16 %v130, %v128
    %v159 = vpack.c.b16 %v133, %v131
    %v160 = vpack.c.b16 %v134, %v132
    %v161 = vpack.c.b16 %v137, %v135
    %v162 = vpack.c.b16 %v138, %v136
    %v163 = vpack.c.b16 %v141, %v139
    %v164 = vpack.c.b16 %v142, %v140
    %v165 = vpack.c.b16 %v145, %v143
    %v166 = vpack.c.b16 %v146, %v144
    %v167 = vpack.c.b16 %v149, %v147
    %v168 = vpack.c.b16 %v150, %v148
    %v169 = vpack.c.b16 %v153, %v151
    %v170 = vpack.c.b16 %v154, %v152
    %v251 = vunpack.c.l.b16 %v43
    %v252 = vunpack.c.h.b16 %v43
    %v253 = vunpack.c.l.b16 %v44
    %v254 = vunpack.c.h.b16 %v44
    %v255 = vunpack.c.l.b16 %v45
    %v256 = vunpack.c.h.b16 %v45
    %v257 = vunpack.c.l.b16 %v46
    %v258 = vunpack.c.h.b16 %v46
    %v259 = vunpack.c.l.b16 %v47
    %v260 = vunpack.c.h.b16 %v47
    %v261 = vunpack.c.l.b16 %v48
    %v262 = vunpack.c.h.b16 %v48
    %v263 = vunpack.c.l.b16 %v49
    %v264 = vunpack.c.h.b16 %v49
    %v265 = vunpack.c.l.b16 %v50
    %v266 = vunpack.c.h.b16 %v50
    %v267 = vunpack.c.l.b16 %v51
    %v268 = vunpack.c.h.b16 %v51
    %v269 = vunpack.c.l.b16 %v52
    %v270 = vunpack.c.h.b16 %v52
    %v271 = vunpack.c.l.b16 %v53
    %v272 = vunpack.c.h.b16 %v53
    %v273 = vunpack.c.l.b16 %v54
    %v274 = vunpack.c.h.b16 %v54
    %v275 = vunpack.c.l.b16 %v55
    %v276 = vunpack.c.h.b16 %v55
    %v277 = vunpack.c.l.b16 %v56
    %v278 = vunpack.c.h.b16 %v56
    %v279 = vunpack.c.l.b16 %v57
    %v280 = vunpack.c.h.b16 %v57
    %v281 = vunpack.c.l.b16 %v58
    %v282 = vunpack.c.h.b16 %v58
    %v283 = vunpack.c.l.b16 %v59
    %v284 = vunpack.c.h.b16 %v59
    %v285 = vunpack.c.l.b16 %v60
    %v286 = vunpack.c.h.b16 %v60
    %v287 = vunpack.c.l.b16 %v61
    %v288 = vunpack.c.h.b16 %v61
    %v289 = vunpack.c.l.b16 %v62
    %v290 = vunpack.c.h.b16 %v62
    %v291 = vunpack.c.l.b16 %v63
    %v292 = vunpack.c.h.b16 %v63
    %v293 = vunpack.c.l.b16 %v64
    %v294 = vunpack.c.h.b16 %v64
    %v295 = vunpack.c.l.b16 %v65
    %v296 = vunpack.c.h.b16 %v65
    %v297 = vunpack.c.l.b16 %v66
    %v298 = vunpack.c.h.b16 %v66
    %v299 = vunpack.c.l.b16 %v67
    %v300 = vunpack.c.h.b16 %v67
    %v301 = vunpack.c.l.b16 %v68
    %v302 = vunpack.c.h.b16 %v68
    %v303 = vunpack.c.l.b16 %v69
    %v304 = vunpack.c.h.b16 %v69
    %v305 = vunpack.c.l.b16 %v70
    %v306 = vunpack.c.h.b16 %v70
    %v307 = vunpack.c.l.b16 %v71
    %v308 = vunpack.c.h.b16 %v71
    %v309 = vunpack.c.l.b16 %v72
    %v310 = vunpack.c.h.b16 %v72
    %v311 = vunpack.c.l.b16 %v73
    %v312 = vunpack.c.h.b16 %v73
    %v313 = vunpack.c.l.b16 %v74
    %v314 = vunpack.c.h.b16 %v74
    %v315 = vunpack.c.l.b16 %v75
    %v316 = vunpack.c.h.b16 %v75
    %v317 = vunpack.c.l.b16 %v76
    %v318 = vunpack.c.h.b16 %v76
    %v319 = vunpack.c.l.b16 %v77
    %v320 = vunpack.c.h.b16 %v77
    %v321 = vunpack.c.l.b16 %v78
    %v322 = vunpack.c.h.b16 %v78
    %v323 = vunpack.c.l.b16 %v79
    %v324 = vunpack.c.h.b16 %v79
    %v325 = vunpack.c.l.b16 %v80
    %v326 = vunpack.c.h.b16 %v80
    %v327 = vunpack.c.l.b16 %v81
    %v328 = vunpack.c.h.b16 %v81
    %v329 = vunpack.c.l.b16 %v82
    %v330 = vunpack.c.h.b16 %v82
    %v331 = vunpack.c.l.b16 %v83
    %v332 = vunpack.c.h.b16 %v83
    %v333 = vunpack.c.l.b16 %v84
    %v334 = vunpack.c.h.b16 %v84
    %v335 = vunpack.c.l.b16 %v85
    %v336 = vunpack.c.h.b16 %v85
    %v337 = vunpack.c.l.b16 %v86
    %v338 = vunpack.c.h.b16 %v86
    %v339 = vunpack.c.l.b16 %v87
    %v340 = vunpack.c.h.b16 %v87
    %v341 = vunpack.c.l.b16 %v88
    %v342 = vunpack.c.h.b16 %v88
    %v343 = vunpack.c.l.b16 %v89
    %v344 = vunpack.c.h.b16 %v89
    %v345 = vunpack.c.l.b16 %v90
    %v346 = vunpack.c.h.b16 %v90
    %v347 = vunpack.c.l.b16 %v91
    %v348 = vunpack.c.h.b16 %v91
    %v349 = vunpack.c.l.b16 %v92
    %v350 = vunpack.c.h.b16 %v92
    %v351 = vunpack.c.l.b16 %v93
    %v352 = vunpack.c.h.b16 %v93
    %v353 = vunpack.c.l.b16 %v94
    %v354 = vunpack.c.h.b16 %v94
    %v355 = vunpack.c.l.b16 %v95
    %v356 = vunpack.c.h.b16 %v95
    %v357 = vunpack.c.l.b16 %v96
    %v358 = vunpack.c.h.b16 %v96
    %v359 = vunpack.c.l.b16 %v97
    %v360 = vunpack.c.h.b16 %v97
    %v361 = vunpack.c.l.b16 %v98
    %v362 = vunpack.c.h.b16 %v98
    %v363 = vunpack.c.l.b16 %v99
    %v364 = vunpack.c.h.b16 %v99
    %v365 = vunpack.c.l.b16 %v100
    %v366 = vunpack.c.h.b16 %v100
    %v367 = vunpack.c.l.b16 %v101
    %v368 = vunpack.c.h.b16 %v101
    %v369 = vunpack.c.l.b16 %v102
    %v370 = vunpack.c.h.b16 %v102
    %v371 = vunpack.c.l.b16 %v103
    %v372 = vunpack.c.h.b16 %v103
    %v373 = vunpack.c.l.b16 %v104
    %v374 = vunpack.c.h.b16 %v104
    %v375 = vunpack.c.l.b16 %v105
    %v376 = vunpack.c.h.b16 %v105
    %v377 = vunpack.c.l.b16 %v106
    %v378 = vunpack.c.h.b16 %v106
    %v379 = vpack.c.b16 %v255, %v251
    %v380 = vpack.c.b16 %v256, %v252
    %v381 = vpack.c.b16 %v257, %v253
    %v382 = vpack.c.b16 %v258, %v254
    %v383 = vpack.c.b16 %v263, %v259
    %v384 = vpack.c.b16 %v264, %v260
    %v385 = vpack.c.b16 %v265, %v261
    %v386 = vpack.c.b16 %v266, %v262
    %v387 = vpack.c.b16 %v271, %v267
    %v388 = vpack.c.b16 %v272, %v268
    %v389 = vpack.c.b16 %v273, %v269
    %v390 = vpack.c.b16 %v274, %v270
    %v391 = vpack.c.b16 %v279, %v275
    %v392 = vpack.c.b16 %v280, %v276
    %v393 = vpack.c.b16 %v281, %v277
    %v394 = vpack.c.b16 %v282, %v278
    %v395 = vpack.c.b16 %v287, %v283
    %v396 = vpack.c.b16 %v288, %v284
    %v397 = vpack.c.b16 %v289, %v285
    %v398 = vpack.c.b16 %v290, %v286
    %v399 = vpack.c.b16 %v295, %v291
    %v400 = vpack.c.b16 %v296, %v292
    %v401 = vpack.c.b16 %v297, %v293
    %v402 = vpack.c.b16 %v298, %v294
    %v403 = vpack.c.b16 %v303, %v299
    %v404 = vpack.c.b16 %v304, %v300
    %v405 = vpack.c.b16 %v305, %v301
    %v406 = vpack.c.b16 %v306, %v302
    %v407 = vpack.c.b16 %v311, %v307
    %v408 = vpack.c.b16 %v312, %v308
    %v409 = vpack.c.b16 %v313, %v309
    %v410 = vpack.c.b16 %v314, %v310
    %v411 = vpack.c.b16 %v319, %v315
    %v412 = vpack.c.b16 %v320, %v316
    %v413 = vpack.c.b16 %v321, %v317
    %v414 = vpack.c.b16 %v322, %v318
    %v415 = vpack.c.b16 %v327, %v323
    %v416 = vpack.c.b16 %v328, %v324
    %v417 = vpack.c.b16 %v329, %v325
    %v418 = vpack.c.b16 %v330, %v326
    %v419 = vpack.c.b16 %v335, %v331
    %v420 = vpack.c.b16 %v336, %v332
    %v421 = vpack.c.b16 %v337, %v333
    %v422 = vpack.c.b16 %v338, %v334
    %v423 = vpack.c.b16 %v343, %v339
    %v424 = vpack.c.b16 %v344, %v340
    %v425 = vpack.c.b16 %v345, %v341
    %v426 = vpack.c.b16 %v346, %v342
    %v427 = vpack.c.b16 %v351, %v347
    %v428 = vpack.c.b16 %v352, %v348
    %v429 = vpack.c.b16 %v353, %v349
    %v430 = vpack.c.b16 %v354, %v350
    %v431 = vpack.c.b16 %v359, %v355
    %v432 = vpack.c.b16 %v360, %v356
    %v433 = vpack.c.b16 %v361, %v357
    %v434 = vpack.c.b16 %v362, %v358
    %v435 = vpack.c.b16 %v367, %v363
    %v436 = vpack.c.b16 %v368, %v364
    %v437 = vpack.c.b16 %v369, %v365
    %v438 = vpack.c.b16 %v370, %v366
    %v439 = vpack.c.b16 %v375, %v371
    %v440 = vpack.c.b16 %v376, %v372
    %v441 = vpack.c.b16 %v377, %v373
    %v442 = vpack.c.b16 %v378, %v374
    %507 = vmatprep.subr.bf16.mxu0 %v380
    %508 = vmatpush1.bf16.msra.mxu0 %v379
    %509 = vmatprep.subr.bf16.mxu0 %v384
    %510 = vmatpush1.bf16.msra.mxu0 %v383
    %511 = vmatprep.subr.bf16.mxu0 %v388
    %512 = vmatpush1.bf16.msra.mxu0 %v387
    %513 = vmatprep.subr.bf16.mxu0 %v392
    %514 = vmatpush1.bf16.msra.mxu0 %v391
    %515 = vmatprep.subr.bf16.mxu0 %v396
    %516 = vmatpush1.bf16.msra.mxu0 %v395
    %517 = vmatprep.subr.bf16.mxu0 %v400
    %518 = vmatpush1.bf16.msra.mxu0 %v399
    %519 = vmatprep.subr.bf16.mxu0 %v404
    %520 = vmatpush1.bf16.msra.mxu0 %v403
    %521 = vmatprep.subr.bf16.mxu0 %v408
    %522 = vmatpush1.bf16.msra.mxu0 %v407
    %523 = vmatprep.subr.bf16.mxu0 %v412
    %524 = vmatpush1.bf16.msra.mxu0 %v411
    %525 = vmatprep.subr.bf16.mxu0 %v416
    %526 = vmatpush1.bf16.msra.mxu0 %v415
    %527 = vmatprep.subr.bf16.mxu0 %v420
    %528 = vmatpush1.bf16.msra.mxu0 %v419
    %529 = vmatprep.subr.bf16.mxu0 %v424
    %530 = vmatpush1.bf16.msra.mxu0 %v423
    %531 = vmatprep.subr.bf16.mxu0 %v428
    %532 = vmatpush1.bf16.msra.mxu0 %v427
    %533 = vmatprep.subr.bf16.mxu0 %v432
    %534 = vmatpush1.bf16.msra.mxu0 %v431
    %535 = vmatprep.subr.bf16.mxu0 %v436
    %536 = vmatpush1.bf16.msra.mxu0 %v435
    %537 = vmatprep.subr.bf16.mxu0 %v440
    %538 = vmatpush1.bf16.msra.mxu0 %v439
    %539 = vmatprep.mubr.bf16.mxu0 %v156
    %540 = vmatmul.mubr.bf16.gmra.mrb[0].mxu0 %v155
    %v541 = vpop.f32.mrb[0].mxu0
    %v542 = vadd.f32 0.0, %v541
    %v543 = vpop.f32.mrb[0].mxu0
    %v544 = vadd.f32 0.0, %v543
    %v545 = vpop.f32.mrb[0].mxu0
    %v546 = vadd.f32 0.0, %v545
    %v547 = vpop.f32.mrb[0].mxu0
    %v548 = vadd.f32 0.0, %v547
    %549 = vmatprep.mubr.bf16.mxu0 %v158
    %550 = vmatmul.mubr.bf16.gmra.mrb[0].mxu0 %v157
    %v551 = vpop.f32.mrb[0].mxu0
    %v552 = vadd.f32 0.0, %v551
    %v553 = vpop.f32.mrb[0].mxu0
    %v554 = vadd.f32 0.0, %v553
    %v555 = vpop.f32.mrb[0].mxu0
    %v556 = vadd.f32 0.0, %v555
    %v557 = vpop.f32.mrb[0].mxu0
    %v558 = vadd.f32 0.0, %v557
    %559 = vmatprep.mubr.bf16.mxu0 %v160
    %560 = vmatmul.mubr.bf16.gmra.mrb[0].mxu0 %v159
    %v561 = vpop.f32.mrb[0].mxu0
    %v562 = vadd.f32 0.0, %v561
    %v563 = vpop.f32.mrb[0].mxu0
    %v564 = vadd.f32 0.0, %v563
    %v565 = vpop.f32.mrb[0].mxu0
    %v566 = vadd.f32 0.0, %v565
    %v567 = vpop.f32.mrb[0].mxu0
    %v568 = vadd.f32 0.0, %v567
    %569 = vmatprep.mubr.bf16.mxu0 %v162
    %570 = vmatmul.mubr.bf16.gmra.mrb[0].mxu0 %v161
    %v571 = vpop.f32.mrb[0].mxu0
    %v572 = vadd.f32 0.0, %v571
    %v573 = vpop.f32.mrb[0].mxu0
    %v574 = vadd.f32 0.0, %v573
    %v575 = vpop.f32.mrb[0].mxu0
    %v576 = vadd.f32 0.0, %v575
    %v577 = vpop.f32.mrb[0].mxu0
    %v578 = vadd.f32 0.0, %v577
    %579 = vmatprep.mubr.bf16.mxu0 %v164
    %580 = vmatmul.mubr.bf16.gmra.mrb[0].mxu0 %v163
    %v581 = vpop.f32.mrb[0].mxu0
    %v582 = vadd.f32 0.0, %v581
    %v583 = vpop.f32.mrb[0].mxu0
    %v584 = vadd.f32 0.0, %v583
    %v585 = vpop.f32.mrb[0].mxu0
    %v586 = vadd.f32 0.0, %v585
    %v587 = vpop.f32.mrb[0].mxu0
    %v588 = vadd.f32 0.0, %v587
    %589 = vmatprep.mubr.bf16.mxu0 %v166
    %590 = vmatmul.mubr.bf16.gmra.mrb[0].mxu0 %v165
    %v591 = vpop.f32.mrb[0].mxu0
    %v592 = vadd.f32 0.0, %v591
    %v593 = vpop.f32.mrb[0].mxu0
    %v594 = vadd.f32 0.0, %v593
    %v595 = vpop.f32.mrb[0].mxu0
    %v596 = vadd.f32 0.0, %v595
    %v597 = vpop.f32.mrb[0].mxu0
    %v598 = vadd.f32 0.0, %v597
    %599 = vmatprep.mubr.bf16.mxu0 %v168
    %600 = vmatmul.mubr.bf16.gmra.mrb[0].mxu0 %v167
    %v601 = vpop.f32.mrb[0].mxu0
    %v602 = vadd.f32 0.0, %v601
    %v603 = vpop.f32.mrb[0].mxu0
    %v604 = vadd.f32 0.0, %v603
    %v605 = vpop.f32.mrb[0].mxu0
    %v606 = vadd.f32 0.0, %v605
    %v607 = vpop.f32.mrb[0].mxu0
    %v608 = vadd.f32 0.0, %v607
    %609 = vmatprep.mubr.bf16.mxu0 %v170
    %610 = vmatmul.mubr.bf16.gmra.mrb[0].mxu0 %v169
    %v611 = vpop.f32.mrb[0].mxu0
    %v612 = vadd.f32 0.0, %v611
    %v613 = vpop.f32.mrb[0].mxu0
    %v614 = vadd.f32 0.0, %v613
    %v615 = vpop.f32.mrb[0].mxu0
    %v616 = vadd.f32 0.0, %v615
    %v617 = vpop.f32.mrb[0].mxu0
    %v618 = vadd.f32 0.0, %v617
    %619 = vdwg.mxu0
    %620 = vmatprep.subr.bf16.mxu0 %v382
    %621 = vmatpush1.bf16.msra.mxu0 %v381
    %622 = vmatprep.subr.bf16.mxu0 %v386
    %623 = vmatpush1.bf16.msra.mxu0 %v385
    %624 = vmatprep.subr.bf16.mxu0 %v390
    %625 = vmatpush1.bf16.msra.mxu0 %v389
    %626 = vmatprep.subr.bf16.mxu0 %v394
    %627 = vmatpush1.bf16.msra.mxu0 %v393
    %628 = vmatprep.subr.bf16.mxu0 %v398
    %629 = vmatpush1.bf16.msra.mxu0 %v397
    %630 = vmatprep.subr.bf16.mxu0 %v402
    %631 = vmatpush1.bf16.msra.mxu0 %v401
    %632 = vmatprep.subr.bf16.mxu0 %v406
    %633 = vmatpush1.bf16.msra.mxu0 %v405
    %634 = vmatprep.subr.bf16.mxu0 %v410
    %635 = vmatpush1.bf16.msra.mxu0 %v409
    %636 = vmatprep.subr.bf16.mxu0 %v414
    %637 = vmatpush1.bf16.msra.mxu0 %v413
    %638 = vmatprep.subr.bf16.mxu0 %v418
    %639 = vmatpush1.bf16.msra.mxu0 %v417
    %640 = vmatprep.subr.bf16.mxu0 %v422
    %641 = vmatpush1.bf16.msra.mxu0 %v421
    %642 = vmatprep.subr.bf16.mxu0 %v426
    %643 = vmatpush1.bf16.msra.mxu0 %v425
    %644 = vmatprep.subr.bf16.mxu0 %v430
    %645 = vmatpush1.bf16.msra.mxu0 %v429
    %646 = vmatprep.subr.bf16.mxu0 %v434
    %647 = vmatpush1.bf16.msra.mxu0 %v433
    %648 = vmatprep.subr.bf16.mxu0 %v438
    %649 = vmatpush1.bf16.msra.mxu0 %v437
    %650 = vmatprep.subr.bf16.mxu0 %v442
    %651 = vmatpush1.bf16.msra.mxu0 %v441
    %652 = vmatprep.mubr.bf16.mxu0 %v156
    %653 = vmatmul.mubr.bf16.gmra.mrb[0].mxu0 %v155
    %v654 = vpop.f32.mrb[0].mxu0
    %v655 = vadd.f32 0.0, %v654
    %v656 = vpop.f32.mrb[0].mxu0
    %v657 = vadd.f32 0.0, %v656
    %v658 = vpop.f32.mrb[0].mxu0
    %v659 = vadd.f32 0.0, %v658
    %v660 = vpop.f32.mrb[0].mxu0
    %v661 = vadd.f32 0.0, %v660
    %662 = vmatprep.mubr.bf16.mxu0 %v158
    %663 = vmatmul.mubr.bf16.gmra.mrb[0].mxu0 %v157
    %v664 = vpop.f32.mrb[0].mxu0
    %v665 = vadd.f32 0.0, %v664
    %v666 = vpop.f32.mrb[0].mxu0
    %v667 = vadd.f32 0.0, %v666
    %v668 = vpop.f32.mrb[0].mxu0
    %v669 = vadd.f32 0.0, %v668
    %v670 = vpop.f32.mrb[0].mxu0
    %v671 = vadd.f32 0.0, %v670
    %672 = vmatprep.mubr.bf16.mxu0 %v160
    %673 = vmatmul.mubr.bf16.gmra.mrb[0].mxu0 %v159
    %v674 = vpop.f32.mrb[0].mxu0
    %v675 = vadd.f32 0.0, %v674
    %v676 = vpop.f32.mrb[0].mxu0
    %v677 = vadd.f32 0.0, %v676
    %v678 = vpop.f32.mrb[0].mxu0
    %v679 = vadd.f32 0.0, %v678
    %v680 = vpop.f32.mrb[0].mxu0
    %v681 = vadd.f32 0.0, %v680
    %682 = vmatprep.mubr.bf16.mxu0 %v162
    %683 = vmatmul.mubr.bf16.gmra.mrb[0].mxu0 %v161
    %v684 = vpop.f32.mrb[0].mxu0
    %v685 = vadd.f32 0.0, %v684
    %v686 = vpop.f32.mrb[0].mxu0
    %v687 = vadd.f32 0.0, %v686
    %v688 = vpop.f32.mrb[0].mxu0
    %v689 = vadd.f32 0.0, %v688
    %v690 = vpop.f32.mrb[0].mxu0
    %v691 = vadd.f32 0.0, %v690
    %692 = vmatprep.mubr.bf16.mxu0 %v164
    %693 = vmatmul.mubr.bf16.gmra.mrb[0].mxu0 %v163
    %v694 = vpop.f32.mrb[0].mxu0
    %v695 = vadd.f32 0.0, %v694
    %v696 = vpop.f32.mrb[0].mxu0
    %v697 = vadd.f32 0.0, %v696
    %v698 = vpop.f32.mrb[0].mxu0
    %v699 = vadd.f32 0.0, %v698
    %v700 = vpop.f32.mrb[0].mxu0
    %v701 = vadd.f32 0.0, %v700
    %702 = vmatprep.mubr.bf16.mxu0 %v166
    %703 = vmatmul.mubr.bf16.gmra.mrb[0].mxu0 %v165
    %v704 = vpop.f32.mrb[0].mxu0
    %v705 = vadd.f32 0.0, %v704
    %v706 = vpop.f32.mrb[0].mxu0
    %v707 = vadd.f32 0.0, %v706
    %v708 = vpop.f32.mrb[0].mxu0
    %v709 = vadd.f32 0.0, %v708
    %v710 = vpop.f32.mrb[0].mxu0
    %v711 = vadd.f32 0.0, %v710
    %712 = vmatprep.mubr.bf16.mxu0 %v168
    %713 = vmatmul.mubr.bf16.gmra.mrb[0].mxu0 %v167
    %v714 = vpop.f32.mrb[0].mxu0
    %v715 = vadd.f32 0.0, %v714
    %v716 = vpop.f32.mrb[0].mxu0
    %v717 = vadd.f32 0.0, %v716
    %v718 = vpop.f32.mrb[0].mxu0
    %v719 = vadd.f32 0.0, %v718
    %v720 = vpop.f32.mrb[0].mxu0
    %v721 = vadd.f32 0.0, %v720
    %722 = vmatprep.mubr.bf16.mxu0 %v170
    %723 = vmatmul.mubr.bf16.gmra.mrb[0].mxu0 %v169
    %v724 = vpop.f32.mrb[0].mxu0
    %v725 = vadd.f32 0.0, %v724
    %v726 = vpop.f32.mrb[0].mxu0
    %v727 = vadd.f32 0.0, %v726
    %v728 = vpop.f32.mrb[0].mxu0
    %v729 = vadd.f32 0.0, %v728
    %v730 = vpop.f32.mrb[0].mxu0
    %v731 = vadd.f32 0.0, %v730
    %732 = vdwg.mxu0
    %v733 = vadd.f32 %v542, %v546
    %v734 = vadd.f32 %v733, %v552
    %v735 = vadd.f32 %v734, %v556
    %v736 = vadd.f32 %v735, %v562
    %v737 = vadd.f32 %v736, %v566
    %v738 = vadd.f32 %v737, %v572
    %v739 = vadd.f32 %v738, %v576
    %v740 = vadd.f32 %v739, %v582
    %v741 = vadd.f32 %v740, %v586
    %v742 = vadd.f32 %v741, %v592
    %v743 = vadd.f32 %v742, %v596
    %v744 = vadd.f32 %v743, %v602
    %v745 = vadd.f32 %v744, %v606
    %v746 = vadd.f32 %v745, %v612
    %v747 = vadd.f32 %v746, %v616
    %v748 = vrot.slane %v747, 4
    %v749 = vadd.f32 %v747, %v748
    %v750 = vrot.slane %v749, 2
    %v751 = vadd.f32 %v749, %v750
    %v752 = vrot.slane %v751, 1
    %v753 = vadd.f32 %v751, %v752
    %v754 = vadd.f32 %v544, %v548
    %v755 = vadd.f32 %v754, %v554
    %v756 = vadd.f32 %v755, %v558
    %v757 = vadd.f32 %v756, %v564
    %v758 = vadd.f32 %v757, %v568
    %v759 = vadd.f32 %v758, %v574
    %v760 = vadd.f32 %v759, %v578
    %v761 = vadd.f32 %v760, %v584
    %v762 = vadd.f32 %v761, %v588
    %v763 = vadd.f32 %v762, %v594
    %v764 = vadd.f32 %v763, %v598
    %v765 = vadd.f32 %v764, %v604
    %v766 = vadd.f32 %v765, %v608
    %v767 = vadd.f32 %v766, %v614
    %v768 = vadd.f32 %v767, %v618
    %v769 = vrot.slane %v768, 4
    %v770 = vadd.f32 %v768, %v769
    %v771 = vrot.slane %v770, 2
    %v772 = vadd.f32 %v770, %v771
    %v773 = vrot.slane %v772, 1
    %v774 = vadd.f32 %v772, %v773
    %v775 = vadd.f32 %v655, %v659
    %v776 = vadd.f32 %v775, %v665
    %v777 = vadd.f32 %v776, %v669
    %v778 = vadd.f32 %v777, %v675
    %v779 = vadd.f32 %v778, %v679
    %v780 = vadd.f32 %v779, %v685
    %v781 = vadd.f32 %v780, %v689
    %v782 = vadd.f32 %v781, %v695
    %v783 = vadd.f32 %v782, %v699
    %v784 = vadd.f32 %v783, %v705
    %v785 = vadd.f32 %v784, %v709
    %v786 = vadd.f32 %v785, %v715
    %v787 = vadd.f32 %v786, %v719
    %v788 = vadd.f32 %v787, %v725
    %v789 = vadd.f32 %v788, %v729
    %v790 = vrot.slane %v789, 4
    %v791 = vadd.f32 %v789, %v790
    %v792 = vrot.slane %v791, 2
    %v793 = vadd.f32 %v791, %v792
    %v794 = vrot.slane %v793, 1
    %v795 = vadd.f32 %v793, %v794
    %v796 = vadd.f32 %v657, %v661
    %v797 = vadd.f32 %v796, %v667
    %v798 = vadd.f32 %v797, %v671
    %v799 = vadd.f32 %v798, %v677
    %v800 = vadd.f32 %v799, %v681
    %v801 = vadd.f32 %v800, %v687
    %v802 = vadd.f32 %v801, %v691
    %v803 = vadd.f32 %v802, %v697
    %v804 = vadd.f32 %v803, %v701
    %v805 = vadd.f32 %v804, %v707
    %v806 = vadd.f32 %v805, %v711
    %v807 = vadd.f32 %v806, %v717
    %v808 = vadd.f32 %v807, %v721
    %v809 = vadd.f32 %v808, %v727
    %v810 = vadd.f32 %v809, %v731
    %v811 = vrot.slane %v810, 4
    %v812 = vadd.f32 %v810, %v811
    %v813 = vrot.slane %v812, 2
    %v814 = vadd.f32 %v812, %v813
    %v815 = vrot.slane %v814, 1
    %v816 = vadd.f32 %v814, %v815
    %v817 = vmul.f32 %v753, 0.0078125
    %v818 = vmul.f32 %v774, 0.0078125
    %v819 = vmul.f32 %v795, 0.0078125
    %v820 = vmul.f32 %v816, 0.0078125
    %v821 = vmul.f32 %v542, %v542
    %v822 = vmul.f32 %v544, %v544
    %v823 = vmul.f32 %v655, %v655
    %v824 = vmul.f32 %v657, %v657
    %v825 = vmul.f32 %v546, %v546
    %v826 = vmul.f32 %v548, %v548
    %v827 = vmul.f32 %v659, %v659
    %v828 = vmul.f32 %v661, %v661
    %v829 = vmul.f32 %v552, %v552
    %v830 = vmul.f32 %v554, %v554
    %v831 = vmul.f32 %v665, %v665
    %v832 = vmul.f32 %v667, %v667
    %v833 = vmul.f32 %v556, %v556
    %v834 = vmul.f32 %v558, %v558
    %v835 = vmul.f32 %v669, %v669
    %v836 = vmul.f32 %v671, %v671
    %v837 = vmul.f32 %v562, %v562
    %v838 = vmul.f32 %v564, %v564
    %v839 = vmul.f32 %v675, %v675
    %v840 = vmul.f32 %v677, %v677
    %v841 = vmul.f32 %v566, %v566
    %v842 = vmul.f32 %v568, %v568
    %v843 = vmul.f32 %v679, %v679
    %v844 = vmul.f32 %v681, %v681
    %v845 = vmul.f32 %v572, %v572
    %v846 = vmul.f32 %v574, %v574
    %v847 = vmul.f32 %v685, %v685
    %v848 = vmul.f32 %v687, %v687
    %v849 = vmul.f32 %v576, %v576
    %v850 = vmul.f32 %v578, %v578
    %v851 = vmul.f32 %v689, %v689
    %v852 = vmul.f32 %v691, %v691
    %v853 = vmul.f32 %v582, %v582
    %v854 = vmul.f32 %v584, %v584
    %v855 = vmul.f32 %v695, %v695
    %v856 = vmul.f32 %v697, %v697
    %v857 = vmul.f32 %v586, %v586
    %v858 = vmul.f32 %v588, %v588
    %v859 = vmul.f32 %v699, %v699
    %v860 = vmul.f32 %v701, %v701
    %v861 = vmul.f32 %v592, %v592
    %v862 = vmul.f32 %v594, %v594
    %v863 = vmul.f32 %v705, %v705
    %v864 = vmul.f32 %v707, %v707
    %v865 = vmul.f32 %v596, %v596
    %v866 = vmul.f32 %v598, %v598
    %v867 = vmul.f32 %v709, %v709
    %v868 = vmul.f32 %v711, %v711
    %v869 = vmul.f32 %v602, %v602
    %v870 = vmul.f32 %v604, %v604
    %v871 = vmul.f32 %v715, %v715
    %v872 = vmul.f32 %v717, %v717
    %v873 = vmul.f32 %v606, %v606
    %v874 = vmul.f32 %v608, %v608
    %v875 = vmul.f32 %v719, %v719
    %v876 = vmul.f32 %v721, %v721
    %v877 = vmul.f32 %v612, %v612
    %v878 = vmul.f32 %v614, %v614
    %v879 = vmul.f32 %v725, %v725
    %v880 = vmul.f32 %v727, %v727
    %v881 = vmul.f32 %v616, %v616
    %v882 = vmul.f32 %v618, %v618
    %v883 = vmul.f32 %v729, %v729
    %v884 = vmul.f32 %v731, %v731
    %v885 = vadd.f32 %v821, %v825
    %v886 = vadd.f32 %v885, %v829
    %v887 = vadd.f32 %v886, %v833
    %v888 = vadd.f32 %v887, %v837
    %v889 = vadd.f32 %v888, %v841
    %v890 = vadd.f32 %v889, %v845
    %v891 = vadd.f32 %v890, %v849
    %v892 = vadd.f32 %v891, %v853
    %v893 = vadd.f32 %v892, %v857
    %v894 = vadd.f32 %v893, %v861
    %v895 = vadd.f32 %v894, %v865
    %v896 = vadd.f32 %v895, %v869
    %v897 = vadd.f32 %v896, %v873
    %v898 = vadd.f32 %v897, %v877
    %v899 = vadd.f32 %v898, %v881
    %v900 = vrot.slane %v899, 4
    %v901 = vadd.f32 %v899, %v900
    %v902 = vrot.slane %v901, 2
    %v903 = vadd.f32 %v901, %v902
    %v904 = vrot.slane %v903, 1
    %v905 = vadd.f32 %v903, %v904
    %v906 = vadd.f32 %v822, %v826
    %v907 = vadd.f32 %v906, %v830
    %v908 = vadd.f32 %v907, %v834
    %v909 = vadd.f32 %v908, %v838
    %v910 = vadd.f32 %v909, %v842
    %v911 = vadd.f32 %v910, %v846
    %v912 = vadd.f32 %v911, %v850
    %v913 = vadd.f32 %v912, %v854
    %v914 = vadd.f32 %v913, %v858
    %v915 = vadd.f32 %v914, %v862
    %v916 = vadd.f32 %v915, %v866
    %v917 = vadd.f32 %v916, %v870
    %v918 = vadd.f32 %v917, %v874
    %v919 = vadd.f32 %v918, %v878
    %v920 = vadd.f32 %v919, %v882
    %v921 = vrot.slane %v920, 4
    %v922 = vadd.f32 %v920, %v921
    %v923 = vrot.slane %v922, 2
    %v924 = vadd.f32 %v922, %v923
    %v925 = vrot.slane %v924, 1
    %v926 = vadd.f32 %v924, %v925
    %v927 = vadd.f32 %v823, %v827
    %v928 = vadd.f32 %v927, %v831
    %v929 = vadd.f32 %v928, %v835
    %v930 = vadd.f32 %v929, %v839
    %v931 = vadd.f32 %v930, %v843
    %v932 = vadd.f32 %v931, %v847
    %v933 = vadd.f32 %v932, %v851
    %v934 = vadd.f32 %v933, %v855
    %v935 = vadd.f32 %v934, %v859
    %v936 = vadd.f32 %v935, %v863
    %v937 = vadd.f32 %v936, %v867
    %v938 = vadd.f32 %v937, %v871
    %v939 = vadd.f32 %v938, %v875
    %v940 = vadd.f32 %v939, %v879
    %v941 = vadd.f32 %v940, %v883
    %v942 = vrot.slane %v941, 4
    %v943 = vadd.f32 %v941, %v942
    %v944 = vrot.slane %v943, 2
    %v945 = vadd.f32 %v943, %v944
    %v946 = vrot.slane %v945, 1
    %v947 = vadd.f32 %v945, %v946
    %v948 = vadd.f32 %v824, %v828
    %v949 = vadd.f32 %v948, %v832
    %v950 = vadd.f32 %v949, %v836
    %v951 = vadd.f32 %v950, %v840
    %v952 = vadd.f32 %v951, %v844
    %v953 = vadd.f32 %v952, %v848
    %v954 = vadd.f32 %v953, %v852
    %v955 = vadd.f32 %v954, %v856
    %v956 = vadd.f32 %v955, %v860
    %v957 = vadd.f32 %v956, %v864
    %v958 = vadd.f32 %v957, %v868
    %v959 = vadd.f32 %v958, %v872
    %v960 = vadd.f32 %v959, %v876
    %v961 = vadd.f32 %v960, %v880
    %v962 = vadd.f32 %v961, %v884
    %v963 = vrot.slane %v962, 4
    %v964 = vadd.f32 %v962, %v963
    %v965 = vrot.slane %v964, 2
    %v966 = vadd.f32 %v964, %v965
    %v967 = vrot.slane %v966, 1
    %v968 = vadd.f32 %v966, %v967
    %v969 = vmul.f32 %v905, 0.0078125
    %v970 = vmul.f32 %v926, 0.0078125
    %v971 = vmul.f32 %v947, 0.0078125
    %v972 = vmul.f32 %v968, 0.0078125
    %v973 = vmul.f32 %v817, %v817
    %v974 = vmul.f32 %v818, %v818
    %v975 = vmul.f32 %v819, %v819
    %v976 = vmul.f32 %v820, %v820
    %v977 = vsub.f32 %v969, %v973
    %v978 = vsub.f32 %v970, %v974
    %v979 = vsub.f32 %v971, %v975
    %v980 = vsub.f32 %v972, %v976
    %v981 = vld [vmem:[%s2] sm:$0xf]
    %v982 = vadd.f32 %v977, 1e-05
    %v983 = vadd.f32 %v978, 1e-05
    %v984 = vadd.f32 %v979, 1e-05
    %v985 = vadd.f32 %v980, 1e-05
    %v986 = vrsqrt.pop %v982
    %v987 = vrsqrt.pop %v983
    %v988 = vrsqrt.pop %v984
    %v989 = vrsqrt.pop %v985
    %v994 = vcombine.low %v986, %v987
    %v995 = vcombine.low %v988, %v989
    %v997 = vunpack.c.l.s4 1966171168
    %v998 = vunpack.c.0.s8 %v997
    %v999 = vlaneseq
    %v1000 = vshrl.u32 %v999, 7
    %v1001 = vsub.s32 %v998, %v1000
    %v1002 = vrot.slane %v994, %v1001
    %v1004 = vunpack.c.l.s4 1966171168
    %v1005 = vunpack.c.0.s8 %v1004
    %v1006 = vlaneseq
    %v1007 = vshrl.u32 %v1006, 7
    %v1008 = vsub.s32 %v1005, %v1007
    %v1009 = vrot.slane %v995, %v1008
    %v1010 = vcombine.low %v1002, %v1009
    %v1012 = vunpack.c.l.s4 1966171168
    %v1013 = vunpack.c.0.s8 %v1012
    %v1014 = vlaneseq
    %v1015 = vshrl.u32 %v1014, 7
    %v1016 = vsub.s32 %v1013, %v1015
    %v1017 = vrot.slane %v1010, %v1016
    %v1019 = vmul.f32 %v981, %v1017
    %v1020 = vld [vmem:[%s3] sm:$0xf]
    %v1022 = vlaneseq
    %v1023 = vshrl.u32 %v1022, 7
    %v1024 = vsub.s32 0, %v1023
    %v1025 = vrot.slane %v1019, %v1024
    %v1026 = vlaneseq
    %v1027 = vshrl.u32 %v1026, 7
    %v1028 = vsub.s32 1, %v1027
    %v1029 = vrot.slane %v1019, %v1028
    %v1030 = vlaneseq
    %v1031 = vshrl.u32 %v1030, 7
    %v1032 = vsub.s32 2, %v1031
    %v1033 = vrot.slane %v1019, %v1032
    %v1034 = vlaneseq
    %v1035 = vshrl.u32 %v1034, 7
    %v1036 = vsub.s32 3, %v1035
    %v1037 = vrot.slane %v1019, %v1036
    %v1042 = vmul.f32 %v817, %v1025
    %v1043 = vmul.f32 %v818, %v1029
    %v1044 = vmul.f32 %v819, %v1033
    %v1045 = vmul.f32 %v820, %v1037
    %v1050 = vcombine.low %v1042, %v1043
    %v1051 = vcombine.low %v1044, %v1045
    %v1053 = vunpack.c.l.s4 1966171168
    %v1054 = vunpack.c.0.s8 %v1053
    %v1055 = vlaneseq
    %v1056 = vshrl.u32 %v1055, 7
    %v1057 = vsub.s32 %v1054, %v1056
    %v1058 = vrot.slane %v1050, %v1057
    %v1060 = vunpack.c.l.s4 1966171168
    %v1061 = vunpack.c.0.s8 %v1060
    %v1062 = vlaneseq
    %v1063 = vshrl.u32 %v1062, 7
    %v1064 = vsub.s32 %v1061, %v1063
    %v1065 = vrot.slane %v1051, %v1064
    %v1066 = vcombine.low %v1058, %v1065
    %v1068 = vunpack.c.l.s4 1966171168
    %v1069 = vunpack.c.0.s8 %v1068
    %v1070 = vlaneseq
    %v1071 = vshrl.u32 %v1070, 7
    %v1072 = vsub.s32 %v1069, %v1071
    %v1073 = vrot.slane %v1066, %v1072
    %v1075 = vsub.f32 %v1020, %v1073
    %v1076 = vmul.f32 %v542, %v1025
    %v1077 = vmul.f32 %v544, %v1029
    %v1078 = vmul.f32 %v655, %v1033
    %v1079 = vmul.f32 %v657, %v1037
    %v1080 = vmul.f32 %v546, %v1025
    %v1081 = vmul.f32 %v548, %v1029
    %v1082 = vmul.f32 %v659, %v1033
    %v1083 = vmul.f32 %v661, %v1037
    %v1084 = vmul.f32 %v552, %v1025
    %v1085 = vmul.f32 %v554, %v1029
    %v1086 = vmul.f32 %v665, %v1033
    %v1087 = vmul.f32 %v667, %v1037
    %v1088 = vmul.f32 %v556, %v1025
    %v1089 = vmul.f32 %v558, %v1029
    %v1090 = vmul.f32 %v669, %v1033
    %v1091 = vmul.f32 %v671, %v1037
    %v1092 = vmul.f32 %v562, %v1025
    %v1093 = vmul.f32 %v564, %v1029
    %v1094 = vmul.f32 %v675, %v1033
    %v1095 = vmul.f32 %v677, %v1037
    %v1096 = vmul.f32 %v566, %v1025
    %v1097 = vmul.f32 %v568, %v1029
    %v1098 = vmul.f32 %v679, %v1033
    %v1099 = vmul.f32 %v681, %v1037
    %v1100 = vmul.f32 %v572, %v1025
    %v1101 = vmul.f32 %v574, %v1029
    %v1102 = vmul.f32 %v685, %v1033
    %v1103 = vmul.f32 %v687, %v1037
    %v1104 = vmul.f32 %v576, %v1025
    %v1105 = vmul.f32 %v578, %v1029
    %v1106 = vmul.f32 %v689, %v1033
    %v1107 = vmul.f32 %v691, %v1037
    %v1108 = vmul.f32 %v582, %v1025
    %v1109 = vmul.f32 %v584, %v1029
    %v1110 = vmul.f32 %v695, %v1033
    %v1111 = vmul.f32 %v697, %v1037
    %v1112 = vmul.f32 %v586, %v1025
    %v1113 = vmul.f32 %v588, %v1029
    %v1114 = vmul.f32 %v699, %v1033
    %v1115 = vmul.f32 %v701, %v1037
    %v1116 = vmul.f32 %v592, %v1025
    %v1117 = vmul.f32 %v594, %v1029
    %v1118 = vmul.f32 %v705, %v1033
    %v1119 = vmul.f32 %v707, %v1037
    %v1120 = vmul.f32 %v596, %v1025
    %v1121 = vmul.f32 %v598, %v1029
    %v1122 = vmul.f32 %v709, %v1033
    %v1123 = vmul.f32 %v711, %v1037
    %v1124 = vmul.f32 %v602, %v1025
    %v1125 = vmul.f32 %v604, %v1029
    %v1126 = vmul.f32 %v715, %v1033
    %v1127 = vmul.f32 %v717, %v1037
    %v1128 = vmul.f32 %v606, %v1025
    %v1129 = vmul.f32 %v608, %v1029
    %v1130 = vmul.f32 %v719, %v1033
    %v1131 = vmul.f32 %v721, %v1037
    %v1132 = vmul.f32 %v612, %v1025
    %v1133 = vmul.f32 %v614, %v1029
    %v1134 = vmul.f32 %v725, %v1033
    %v1135 = vmul.f32 %v727, %v1037
    %v1136 = vmul.f32 %v616, %v1025
    %v1137 = vmul.f32 %v618, %v1029
    %v1138 = vmul.f32 %v729, %v1033
    %v1139 = vmul.f32 %v731, %v1037
    %v1141 = vlaneseq
    %v1142 = vshrl.u32 %v1141, 7
    %v1143 = vsub.s32 0, %v1142
    %v1144 = vrot.slane %v1075, %v1143
    %v1145 = vlaneseq
    %v1146 = vshrl.u32 %v1145, 7
    %v1147 = vsub.s32 1, %v1146
    %v1148 = vrot.slane %v1075, %v1147
    %v1149 = vlaneseq
    %v1150 = vshrl.u32 %v1149, 7
    %v1151 = vsub.s32 2, %v1150
    %v1152 = vrot.slane %v1075, %v1151
    %v1153 = vlaneseq
    %v1154 = vshrl.u32 %v1153, 7
    %v1155 = vsub.s32 3, %v1154
    %v1156 = vrot.slane %v1075, %v1155
    %v1161 = vadd.f32 %v1076, %v1144
    %v1162 = vadd.f32 %v1077, %v1148
    %v1163 = vadd.f32 %v1078, %v1152
    %v1164 = vadd.f32 %v1079, %v1156
    %v1165 = vadd.f32 %v1080, %v1144
    %v1166 = vadd.f32 %v1081, %v1148
    %v1167 = vadd.f32 %v1082, %v1152
    %v1168 = vadd.f32 %v1083, %v1156
    %v1169 = vadd.f32 %v1084, %v1144
    %v1170 = vadd.f32 %v1085, %v1148
    %v1171 = vadd.f32 %v1086, %v1152
    %v1172 = vadd.f32 %v1087, %v1156
    %v1173 = vadd.f32 %v1088, %v1144
    %v1174 = vadd.f32 %v1089, %v1148
    %v1175 = vadd.f32 %v1090, %v1152
    %v1176 = vadd.f32 %v1091, %v1156
    %v1177 = vadd.f32 %v1092, %v1144
    %v1178 = vadd.f32 %v1093, %v1148
    %v1179 = vadd.f32 %v1094, %v1152
    %v1180 = vadd.f32 %v1095, %v1156
    %v1181 = vadd.f32 %v1096, %v1144
    %v1182 = vadd.f32 %v1097, %v1148
    %v1183 = vadd.f32 %v1098, %v1152
    %v1184 = vadd.f32 %v1099, %v1156
    %v1185 = vadd.f32 %v1100, %v1144
    %v1186 = vadd.f32 %v1101, %v1148
    %v1187 = vadd.f32 %v1102, %v1152
    %v1188 = vadd.f32 %v1103, %v1156
    %v1189 = vadd.f32 %v1104, %v1144
    %v1190 = vadd.f32 %v1105, %v1148
    %v1191 = vadd.f32 %v1106, %v1152
    %v1192 = vadd.f32 %v1107, %v1156
    %v1193 = vadd.f32 %v1108, %v1144
    %v1194 = vadd.f32 %v1109, %v1148
    %v1195 = vadd.f32 %v1110, %v1152
    %v1196 = vadd.f32 %v1111, %v1156
    %v1197 = vadd.f32 %v1112, %v1144
    %v1198 = vadd.f32 %v1113, %v1148
    %v1199 = vadd.f32 %v1114, %v1152
    %v1200 = vadd.f32 %v1115, %v1156
    %v1201 = vadd.f32 %v1116, %v1144
    %v1202 = vadd.f32 %v1117, %v1148
    %v1203 = vadd.f32 %v1118, %v1152
    %v1204 = vadd.f32 %v1119, %v1156
    %v1205 = vadd.f32 %v1120, %v1144
    %v1206 = vadd.f32 %v1121, %v1148
    %v1207 = vadd.f32 %v1122, %v1152
    %v1208 = vadd.f32 %v1123, %v1156
    %v1209 = vadd.f32 %v1124, %v1144
    %v1210 = vadd.f32 %v1125, %v1148
    %v1211 = vadd.f32 %v1126, %v1152
    %v1212 = vadd.f32 %v1127, %v1156
    %v1213 = vadd.f32 %v1128, %v1144
    %v1214 = vadd.f32 %v1129, %v1148
    %v1215 = vadd.f32 %v1130, %v1152
    %v1216 = vadd.f32 %v1131, %v1156
    %v1217 = vadd.f32 %v1132, %v1144
    %v1218 = vadd.f32 %v1133, %v1148
    %v1219 = vadd.f32 %v1134, %v1152
    %v1220 = vadd.f32 %v1135, %v1156
    %v1221 = vadd.f32 %v1136, %v1144
    %v1222 = vadd.f32 %v1137, %v1148
    %v1223 = vadd.f32 %v1138, %v1152
    %v1224 = vadd.f32 %v1139, %v1156
    %v1225 = vmul.f32 %v1161, 0.1
    %v1226 = vmul.f32 %v1162, 0.1
    %v1227 = vmul.f32 %v1163, 0.1
    %v1228 = vmul.f32 %v1164, 0.1
    %v1229 = vmul.f32 %v1165, 0.1
    %v1230 = vmul.f32 %v1166, 0.1
    %v1231 = vmul.f32 %v1167, 0.1
    %v1232 = vmul.f32 %v1168, 0.1
    %v1233 = vmul.f32 %v1169, 0.1
    %v1234 = vmul.f32 %v1170, 0.1
    %v1235 = vmul.f32 %v1171, 0.1
    %v1236 = vmul.f32 %v1172, 0.1
    %v1237 = vmul.f32 %v1173, 0.1
    %v1238 = vmul.f32 %v1174, 0.1
    %v1239 = vmul.f32 %v1175, 0.1
    %v1240 = vmul.f32 %v1176, 0.1
    %v1241 = vmul.f32 %v1177, 0.1
    %v1242 = vmul.f32 %v1178, 0.1
    %v1243 = vmul.f32 %v1179, 0.1
    %v1244 = vmul.f32 %v1180, 0.1
    %v1245 = vmul.f32 %v1181, 0.1
    %v1246 = vmul.f32 %v1182, 0.1
    %v1247 = vmul.f32 %v1183, 0.1
    %v1248 = vmul.f32 %v1184, 0.1
    %v1249 = vmul.f32 %v1185, 0.1
    %v1250 = vmul.f32 %v1186, 0.1
    %v1251 = vmul.f32 %v1187, 0.1
    %v1252 = vmul.f32 %v1188, 0.1
    %v1253 = vmul.f32 %v1189, 0.1
    %v1254 = vmul.f32 %v1190, 0.1
    %v1255 = vmul.f32 %v1191, 0.1
    %v1256 = vmul.f32 %v1192, 0.1
    %v1257 = vmul.f32 %v1193, 0.1
    %v1258 = vmul.f32 %v1194, 0.1
    %v1259 = vmul.f32 %v1195, 0.1
    %v1260 = vmul.f32 %v1196, 0.1
    %v1261 = vmul.f32 %v1197, 0.1
    %v1262 = vmul.f32 %v1198, 0.1
    %v1263 = vmul.f32 %v1199, 0.1
    %v1264 = vmul.f32 %v1200, 0.1
    %v1265 = vmul.f32 %v1201, 0.1
    %v1266 = vmul.f32 %v1202, 0.1
    %v1267 = vmul.f32 %v1203, 0.1
    %v1268 = vmul.f32 %v1204, 0.1
    %v1269 = vmul.f32 %v1205, 0.1
    %v1270 = vmul.f32 %v1206, 0.1
    %v1271 = vmul.f32 %v1207, 0.1
    %v1272 = vmul.f32 %v1208, 0.1
    %v1273 = vmul.f32 %v1209, 0.1
    %v1274 = vmul.f32 %v1210, 0.1
    %v1275 = vmul.f32 %v1211, 0.1
    %v1276 = vmul.f32 %v1212, 0.1
    %v1277 = vmul.f32 %v1213, 0.1
    %v1278 = vmul.f32 %v1214, 0.1
    %v1279 = vmul.f32 %v1215, 0.1
    %v1280 = vmul.f32 %v1216, 0.1
    %v1281 = vmul.f32 %v1217, 0.1
    %v1282 = vmul.f32 %v1218, 0.1
    %v1283 = vmul.f32 %v1219, 0.1
    %v1284 = vmul.f32 %v1220, 0.1
    %v1285 = vmul.f32 %v1221, 0.1
    %v1286 = vmul.f32 %v1222, 0.1
    %v1287 = vmul.f32 %v1223, 0.1
    %v1288 = vmul.f32 %v1224, 0.1
    %v1289 = vmax.f32 %v1161, %v1225
    %v1290 = vmax.f32 %v1162, %v1226
    %v1291 = vmax.f32 %v1163, %v1227
    %v1292 = vmax.f32 %v1164, %v1228
    %v1293 = vmax.f32 %v1165, %v1229
    %v1294 = vmax.f32 %v1166, %v1230
    %v1295 = vmax.f32 %v1167, %v1231
    %v1296 = vmax.f32 %v1168, %v1232
    %v1297 = vmax.f32 %v1169, %v1233
    %v1298 = vmax.f32 %v1170, %v1234
    %v1299 = vmax.f32 %v1171, %v1235
    %v1300 = vmax.f32 %v1172, %v1236
    %v1301 = vmax.f32 %v1173, %v1237
    %v1302 = vmax.f32 %v1174, %v1238
    %v1303 = vmax.f32 %v1175, %v1239
    %v1304 = vmax.f32 %v1176, %v1240
    %v1305 = vmax.f32 %v1177, %v1241
    %v1306 = vmax.f32 %v1178, %v1242
    %v1307 = vmax.f32 %v1179, %v1243
    %v1308 = vmax.f32 %v1180, %v1244
    %v1309 = vmax.f32 %v1181, %v1245
    %v1310 = vmax.f32 %v1182, %v1246
    %v1311 = vmax.f32 %v1183, %v1247
    %v1312 = vmax.f32 %v1184, %v1248
    %v1313 = vmax.f32 %v1185, %v1249
    %v1314 = vmax.f32 %v1186, %v1250
    %v1315 = vmax.f32 %v1187, %v1251
    %v1316 = vmax.f32 %v1188, %v1252
    %v1317 = vmax.f32 %v1189, %v1253
    %v1318 = vmax.f32 %v1190, %v1254
    %v1319 = vmax.f32 %v1191, %v1255
    %v1320 = vmax.f32 %v1192, %v1256
    %v1321 = vmax.f32 %v1193, %v1257
    %v1322 = vmax.f32 %v1194, %v1258
    %v1323 = vmax.f32 %v1195, %v1259
    %v1324 = vmax.f32 %v1196, %v1260
    %v1325 = vmax.f32 %v1197, %v1261
    %v1326 = vmax.f32 %v1198, %v1262
    %v1327 = vmax.f32 %v1199, %v1263
    %v1328 = vmax.f32 %v1200, %v1264
    %v1329 = vmax.f32 %v1201, %v1265
    %v1330 = vmax.f32 %v1202, %v1266
    %v1331 = vmax.f32 %v1203, %v1267
    %v1332 = vmax.f32 %v1204, %v1268
    %v1333 = vmax.f32 %v1205, %v1269
    %v1334 = vmax.f32 %v1206, %v1270
    %v1335 = vmax.f32 %v1207, %v1271
    %v1336 = vmax.f32 %v1208, %v1272
    %v1337 = vmax.f32 %v1209, %v1273
    %v1338 = vmax.f32 %v1210, %v1274
    %v1339 = vmax.f32 %v1211, %v1275
    %v1340 = vmax.f32 %v1212, %v1276
    %v1341 = vmax.f32 %v1213, %v1277
    %v1342 = vmax.f32 %v1214, %v1278
    %v1343 = vmax.f32 %v1215, %v1279
    %v1344 = vmax.f32 %v1216, %v1280
    %v1345 = vmax.f32 %v1217, %v1281
    %v1346 = vmax.f32 %v1218, %v1282
    %v1347 = vmax.f32 %v1219, %v1283
    %v1348 = vmax.f32 %v1220, %v1284
    %v1349 = vmax.f32 %v1221, %v1285
    %v1350 = vmax.f32 %v1222, %v1286
    %v1351 = vmax.f32 %v1223, %v1287
    %v1352 = vmax.f32 %v1224, %v1288
    %1353 = vst [vmem:[#allocation2] sm:$0xff] %v1289
    %1354 = vst [vmem:[#allocation2 + $0x8] sm:$0xff] %v1290
    %1355 = vst [vmem:[#allocation2 + $0x10] sm:$0xff] %v1291
    %1356 = vst [vmem:[#allocation2 + $0x18] sm:$0xff] %v1292
    %1357 = vst [vmem:[#allocation2 + $0x20] sm:$0xff] %v1293
    %1358 = vst [vmem:[#allocation2 + $0x28] sm:$0xff] %v1294
    %1359 = vst [vmem:[#allocation2 + $0x30] sm:$0xff] %v1295
    %1360 = vst [vmem:[#allocation2 + $0x38] sm:$0xff] %v1296
    %1361 = vst [vmem:[#allocation2 + $0x40] sm:$0xff] %v1297
    %1362 = vst [vmem:[#allocation2 + $0x48] sm:$0xff] %v1298
    %1363 = vst [vmem:[#allocation2 + $0x50] sm:$0xff] %v1299
    %1364 = vst [vmem:[#allocation2 + $0x58] sm:$0xff] %v1300
    %1365 = vst [vmem:[#allocation2 + $0x60] sm:$0xff] %v1301
    %1366 = vst [vmem:[#allocation2 + $0x68] sm:$0xff] %v1302
    %1367 = vst [vmem:[#allocation2 + $0x70] sm:$0xff] %v1303
    %1368 = vst [vmem:[#allocation2 + $0x78] sm:$0xff] %v1304
    %1369 = vst [vmem:[#allocation2 + $0x80] sm:$0xff] %v1305
    %1370 = vst [vmem:[#allocation2 + $0x88] sm:$0xff] %v1306
    %1371 = vst [vmem:[#allocation2 + $0x90] sm:$0xff] %v1307
    %1372 = vst [vmem:[#allocation2 + $0x98] sm:$0xff] %v1308
    %1373 = vst [vmem:[#allocation2 + $0xa0] sm:$0xff] %v1309
    %1374 = vst [vmem:[#allocation2 + $0xa8] sm:$0xff] %v1310
    %1375 = vst [vmem:[#allocation2 + $0xb0] sm:$0xff] %v1311
    %1376 = vst [vmem:[#allocation2 + $0xb8] sm:$0xff] %v1312
    %1377 = vst [vmem:[#allocation2 + $0xc0] sm:$0xff] %v1313
    %1378 = vst [vmem:[#allocation2 + $0xc8] sm:$0xff] %v1314
    %1379 = vst [vmem:[#allocation2 + $0xd0] sm:$0xff] %v1315
    %1380 = vst [vmem:[#allocation2 + $0xd8] sm:$0xff] %v1316
    %1381 = vst [vmem:[#allocation2 + $0xe0] sm:$0xff] %v1317
    %1382 = vst [vmem:[#allocation2 + $0xe8] sm:$0xff] %v1318
    %1383 = vst [vmem:[#allocation2 + $0xf0] sm:$0xff] %v1319
    %1384 = vst [vmem:[#allocation2 + $0xf8] sm:$0xff] %v1320
    %1385 = vst [vmem:[#allocation2 + $0x100] sm:$0xff] %v1321
    %1386 = vst [vmem:[#allocation2 + $0x108] sm:$0xff] %v1322
    %1387 = vst [vmem:[#allocation2 + $0x110] sm:$0xff] %v1323
    %1388 = vst [vmem:[#allocation2 + $0x118] sm:$0xff] %v1324
    %1389 = vst [vmem:[#allocation2 + $0x120] sm:$0xff] %v1325
    %1390 = vst [vmem:[#allocation2 + $0x128] sm:$0xff] %v1326
    %1391 = vst [vmem:[#allocation2 + $0x130] sm:$0xff] %v1327
    %1392 = vst [vmem:[#allocation2 + $0x138] sm:$0xff] %v1328
    %1393 = vst [vmem:[#allocation2 + $0x140] sm:$0xff] %v1329
    %1394 = vst [vmem:[#allocation2 + $0x148] sm:$0xff] %v1330
    %1395 = vst [vmem:[#allocation2 + $0x150] sm:$0xff] %v1331
    %1396 = vst [vmem:[#allocation2 + $0x158] sm:$0xff] %v1332
    %1397 = vst [vmem:[#allocation2 + $0x160] sm:$0xff] %v1333
    %1398 = vst [vmem:[#allocation2 + $0x168] sm:$0xff] %v1334
    %1399 = vst [vmem:[#allocation2 + $0x170] sm:$0xff] %v1335
    %1400 = vst [vmem:[#allocation2 + $0x178] sm:$0xff] %v1336
    %1401 = vst [vmem:[#allocation2 + $0x180] sm:$0xff] %v1337
    %1402 = vst [vmem:[#allocation2 + $0x188] sm:$0xff] %v1338
    %1403 = vst [vmem:[#allocation2 + $0x190] sm:$0xff] %v1339
    %1404 = vst [vmem:[#allocation2 + $0x198] sm:$0xff] %v1340
    %1405 = vst [vmem:[#allocation2 + $0x1a0] sm:$0xff] %v1341
    %1406 = vst [vmem:[#allocation2 + $0x1a8] sm:$0xff] %v1342
    %1407 = vst [vmem:[#allocation2 + $0x1b0] sm:$0xff] %v1343
    %1408 = vst [vmem:[#allocation2 + $0x1b8] sm:$0xff] %v1344
    %1409 = vst [vmem:[#allocation2 + $0x1c0] sm:$0xff] %v1345
    %1410 = vst [vmem:[#allocation2 + $0x1c8] sm:$0xff] %v1346
    %1411 = vst [vmem:[#allocation2 + $0x1d0] sm:$0xff] %v1347
    %1412 = vst [vmem:[#allocation2 + $0x1d8] sm:$0xff] %v1348
    %1413 = vst [vmem:[#allocation2 + $0x1e0] sm:$0xff] %v1349
    %1414 = vst [vmem:[#allocation2 + $0x1e8] sm:$0xff] %v1350
    %1415 = vst [vmem:[#allocation2 + $0x1f0] sm:$0xff] %v1351
    %1416 = vst [vmem:[#allocation2 + $0x1f8] sm:$0xff] %v1352
    %v1417 = vpack.c.bf16 %v1293, %v1289
    %v1418 = vpack.c.bf16 %v1294, %v1290
    %v1419 = vpack.c.bf16 %v1295, %v1291
    %v1420 = vpack.c.bf16 %v1296, %v1292
    %v1421 = vpack.c.bf16 %v1301, %v1297
    %v1422 = vpack.c.bf16 %v1302, %v1298
    %v1423 = vpack.c.bf16 %v1303, %v1299
    %v1424 = vpack.c.bf16 %v1304, %v1300
    %v1425 = vpack.c.bf16 %v1309, %v1305
    %v1426 = vpack.c.bf16 %v1310, %v1306
    %v1427 = vpack.c.bf16 %v1311, %v1307
    %v1428 = vpack.c.bf16 %v1312, %v1308
    %v1429 = vpack.c.bf16 %v1317, %v1313
    %v1430 = vpack.c.bf16 %v1318, %v1314
    %v1431 = vpack.c.bf16 %v1319, %v1315
    %v1432 = vpack.c.bf16 %v1320, %v1316
    %v1433 = vpack.c.bf16 %v1325, %v1321
    %v1434 = vpack.c.bf16 %v1326, %v1322
    %v1435 = vpack.c.bf16 %v1327, %v1323
    %v1436 = vpack.c.bf16 %v1328, %v1324
    %v1437 = vpack.c.bf16 %v1333, %v1329
    %v1438 = vpack.c.bf16 %v1334, %v1330
    %v1439 = vpack.c.bf16 %v1335, %v1331
    %v1440 = vpack.c.bf16 %v1336, %v1332
    %v1441 = vpack.c.bf16 %v1341, %v1337
    %v1442 = vpack.c.bf16 %v1342, %v1338
    %v1443 = vpack.c.bf16 %v1343, %v1339
    %v1444 = vpack.c.bf16 %v1344, %v1340
    %v1445 = vpack.c.bf16 %v1349, %v1345
    %v1446 = vpack.c.bf16 %v1350, %v1346
    %v1447 = vpack.c.bf16 %v1351, %v1347
    %v1448 = vpack.c.bf16 %v1352, %v1348
    %v1449 = vld [vmem:[%s4] sm:$0xf]
    %v1450 = vld [vmem:[%s4 + $0x4] sm:$0xf]
    %v1451 = vld [vmem:[%s4 + $0x8] sm:$0xf]
    %v1452 = vld [vmem:[%s4 + $0xc] sm:$0xf]
    %v1453 = vld [vmem:[%s4 + $0x10] sm:$0xf]
    %v1454 = vld [vmem:[%s4 + $0x14] sm:$0xf]
    %v1455 = vld [vmem:[%s4 + $0x18] sm:$0xf]
    %v1456 = vld [vmem:[%s4 + $0x1c] sm:$0xf]
    %v1457 = vld [vmem:[%s4 + $0x20] sm:$0xf]
    %v1458 = vld [vmem:[%s4 + $0x24] sm:$0xf]
    %v1459 = vld [vmem:[%s4 + $0x28] sm:$0xf]
    %v1460 = vld [vmem:[%s4 + $0x2c] sm:$0xf]
    %v1461 = vld [vmem:[%s4 + $0x30] sm:$0xf]
    %v1462 = vld [vmem:[%s4 + $0x34] sm:$0xf]
    %v1463 = vld [vmem:[%s4 + $0x38] sm:$0xf]
    %v1464 = vld [vmem:[%s4 + $0x3c] sm:$0xf]
    %v1465 = vld [vmem:[%s4 + $0x40] sm:$0xf]
    %v1466 = vld [vmem:[%s4 + $0x44] sm:$0xf]
    %v1467 = vld [vmem:[%s4 + $0x48] sm:$0xf]
    %v1468 = vld [vmem:[%s4 + $0x4c] sm:$0xf]
    %v1469 = vld [vmem:[%s4 + $0x50] sm:$0xf]
    %v1470 = vld [vmem:[%s4 + $0x54] sm:$0xf]
    %v1471 = vld [vmem:[%s4 + $0x58] sm:$0xf]
    %v1472 = vld [vmem:[%s4 + $0x5c] sm:$0xf]
    %v1473 = vld [vmem:[%s4 + $0x60] sm:$0xf]
    %v1474 = vld [vmem:[%s4 + $0x64] sm:$0xf]
    %v1475 = vld [vmem:[%s4 + $0x68] sm:$0xf]
    %v1476 = vld [vmem:[%s4 + $0x6c] sm:$0xf]
    %v1477 = vld [vmem:[%s4 + $0x70] sm:$0xf]
    %v1478 = vld [vmem:[%s4 + $0x74] sm:$0xf]
    %v1479 = vld [vmem:[%s4 + $0x78] sm:$0xf]
    %v1480 = vld [vmem:[%s4 + $0x7c] sm:$0xf]
    %v1481 = vld [vmem:[%s4 + $0x80] sm:$0xf]
    %v1482 = vld [vmem:[%s4 + $0x84] sm:$0xf]
    %v1483 = vld [vmem:[%s4 + $0x88] sm:$0xf]
    %v1484 = vld [vmem:[%s4 + $0x8c] sm:$0xf]
    %v1485 = vld [vmem:[%s4 + $0x90] sm:$0xf]
    %v1486 = vld [vmem:[%s4 + $0x94] sm:$0xf]
    %v1487 = vld [vmem:[%s4 + $0x98] sm:$0xf]
    %v1488 = vld [vmem:[%s4 + $0x9c] sm:$0xf]
    %v1489 = vld [vmem:[%s4 + $0xa0] sm:$0xf]
    %v1490 = vld [vmem:[%s4 + $0xa4] sm:$0xf]
    %v1491 = vld [vmem:[%s4 + $0xa8] sm:$0xf]
    %v1492 = vld [vmem:[%s4 + $0xac] sm:$0xf]
    %v1493 = vld [vmem:[%s4 + $0xb0] sm:$0xf]
    %v1494 = vld [vmem:[%s4 + $0xb4] sm:$0xf]
    %v1495 = vld [vmem:[%s4 + $0xb8] sm:$0xf]
    %v1496 = vld [vmem:[%s4 + $0xbc] sm:$0xf]
    %v1497 = vld [vmem:[%s4 + $0xc0] sm:$0xf]
    %v1498 = vld [vmem:[%s4 + $0xc4] sm:$0xf]
    %v1499 = vld [vmem:[%s4 + $0xc8] sm:$0xf]
    %v1500 = vld [vmem:[%s4 + $0xcc] sm:$0xf]
    %v1501 = vld [vmem:[%s4 + $0xd0] sm:$0xf]
    %v1502 = vld [vmem:[%s4 + $0xd4] sm:$0xf]
    %v1503 = vld [vmem:[%s4 + $0xd8] sm:$0xf]
    %v1504 = vld [vmem:[%s4 + $0xdc] sm:$0xf]
    %v1505 = vld [vmem:[%s4 + $0xe0] sm:$0xf]
    %v1506 = vld [vmem:[%s4 + $0xe4] sm:$0xf]
    %v1507 = vld [vmem:[%s4 + $0xe8] sm:$0xf]
    %v1508 = vld [vmem:[%s4 + $0xec] sm:$0xf]
    %v1509 = vld [vmem:[%s4 + $0xf0] sm:$0xf]
    %v1510 = vld [vmem:[%s4 + $0xf4] sm:$0xf]
    %v1511 = vld [vmem:[%s4 + $0xf8] sm:$0xf]
    %v1512 = vld [vmem:[%s4 + $0xfc] sm:$0xf]
    %v1513 = vld [vmem:[%s5] sm:$0x1]
    %v1515 = vlaneseq
    %v1516 = vshrl.u32 %v1515, 7
    %v1517 = vsub.s32 0, %v1516
    %v1518 = vrot.slane %v1513, %v1517
    %v1584 = vunpack.c.l.b16 %v1449
    %v1585 = vunpack.c.l.b16 %v1450
    %v1586 = vunpack.c.l.b16 %v1451
    %v1587 = vunpack.c.l.b16 %v1452
    %v1588 = vunpack.c.l.b16 %v1453
    %v1589 = vunpack.c.l.b16 %v1454
    %v1590 = vunpack.c.l.b16 %v1455
    %v1591 = vunpack.c.l.b16 %v1456
    %v1592 = vunpack.c.l.b16 %v1457
    %v1593 = vunpack.c.l.b16 %v1458
    %v1594 = vunpack.c.l.b16 %v1459
    %v1595 = vunpack.c.l.b16 %v1460
    %v1596 = vunpack.c.l.b16 %v1461
    %v1597 = vunpack.c.l.b16 %v1462
    %v1598 = vunpack.c.l.b16 %v1463
    %v1599 = vunpack.c.l.b16 %v1464
    %v1600 = vunpack.c.l.b16 %v1465
    %v1601 = vunpack.c.l.b16 %v1466
    %v1602 = vunpack.c.l.b16 %v1467
    %v1603 = vunpack.c.l.b16 %v1468
    %v1604 = vunpack.c.l.b16 %v1469
    %v1605 = vunpack.c.l.b16 %v1470
    %v1606 = vunpack.c.l.b16 %v1471
    %v1607 = vunpack.c.l.b16 %v1472
    %v1608 = vunpack.c.l.b16 %v1473
    %v1609 = vunpack.c.l.b16 %v1474
    %v1610 = vunpack.c.l.b16 %v1475
    %v1611 = vunpack.c.l.b16 %v1476
    %v1612 = vunpack.c.l.b16 %v1477
    %v1613 = vunpack.c.l.b16 %v1478
    %v1614 = vunpack.c.l.b16 %v1479
    %v1615 = vunpack.c.l.b16 %v1480
    %v1616 = vunpack.c.l.b16 %v1481
    %v1617 = vunpack.c.l.b16 %v1482
    %v1618 = vunpack.c.l.b16 %v1483
    %v1619 = vunpack.c.l.b16 %v1484
    %v1620 = vunpack.c.l.b16 %v1485
    %v1621 = vunpack.c.l.b16 %v1486
    %v1622 = vunpack.c.l.b16 %v1487
    %v1623 = vunpack.c.l.b16 %v1488
    %v1624 = vunpack.c.l.b16 %v1489
    %v1625 = vunpack.c.l.b16 %v1490
    %v1626 = vunpack.c.l.b16 %v1491
    %v1627 = vunpack.c.l.b16 %v1492
    %v1628 = vunpack.c.l.b16 %v1493
    %v1629 = vunpack.c.l.b16 %v1494
    %v1630 = vunpack.c.l.b16 %v1495
    %v1631 = vunpack.c.l.b16 %v1496
    %v1632 = vunpack.c.l.b16 %v1497
    %v1633 = vunpack.c.l.b16 %v1498
    %v1634 = vunpack.c.l.b16 %v1499
    %v1635 = vunpack.c.l.b16 %v1500
    %v1636 = vunpack.c.l.b16 %v1501
    %v1637 = vunpack.c.l.b16 %v1502
    %v1638 = vunpack.c.l.b16 %v1503
    %v1639 = vunpack.c.l.b16 %v1504
    %v1640 = vunpack.c.l.b16 %v1505
    %v1641 = vunpack.c.l.b16 %v1506
    %v1642 = vunpack.c.l.b16 %v1507
    %v1643 = vunpack.c.l.b16 %v1508
    %v1644 = vunpack.c.l.b16 %v1509
    %v1645 = vunpack.c.l.b16 %v1510
    %v1646 = vunpack.c.l.b16 %v1511
    %v1647 = vunpack.c.l.b16 %v1512
    %v1648 = vpack.c.b16 %v1585, %v1584
    %v1649 = vpack.c.b16 %v1587, %v1586
    %v1650 = vpack.c.b16 %v1589, %v1588
    %v1651 = vpack.c.b16 %v1591, %v1590
    %v1652 = vpack.c.b16 %v1593, %v1592
    %v1653 = vpack.c.b16 %v1595, %v1594
    %v1654 = vpack.c.b16 %v1597, %v1596
    %v1655 = vpack.c.b16 %v1599, %v1598
    %v1656 = vpack.c.b16 %v1601, %v1600
    %v1657 = vpack.c.b16 %v1603, %v1602
    %v1658 = vpack.c.b16 %v1605, %v1604
    %v1659 = vpack.c.b16 %v1607, %v1606
    %v1660 = vpack.c.b16 %v1609, %v1608
    %v1661 = vpack.c.b16 %v1611, %v1610
    %v1662 = vpack.c.b16 %v1613, %v1612
    %v1663 = vpack.c.b16 %v1615, %v1614
    %v1664 = vpack.c.b16 %v1617, %v1616
    %v1665 = vpack.c.b16 %v1619, %v1618
    %v1666 = vpack.c.b16 %v1621, %v1620
    %v1667 = vpack.c.b16 %v1623, %v1622
    %v1668 = vpack.c.b16 %v1625, %v1624
    %v1669 = vpack.c.b16 %v1627, %v1626
    %v1670 = vpack.c.b16 %v1629, %v1628
    %v1671 = vpack.c.b16 %v1631, %v1630
    %v1672 = vpack.c.b16 %v1633, %v1632
    %v1673 = vpack.c.b16 %v1635, %v1634
    %v1674 = vpack.c.b16 %v1637, %v1636
    %v1675 = vpack.c.b16 %v1639, %v1638
    %v1676 = vpack.c.b16 %v1641, %v1640
    %v1677 = vpack.c.b16 %v1643, %v1642
    %v1678 = vpack.c.b16 %v1645, %v1644
    %v1679 = vpack.c.b16 %v1647, %v1646
    %1712 = vmatprep.subr.bf16.mxu0 0
    %1713 = vmatpush1.bf16.msra.mxu0 %v1648
    %1714 = vmatprep.subr.bf16.mxu0 0
    %1715 = vmatpush1.bf16.msra.mxu0 %v1649
    %1716 = vmatprep.subr.bf16.mxu0 0
    %1717 = vmatpush1.bf16.msra.mxu0 %v1650
    %1718 = vmatprep.subr.bf16.mxu0 0
    %1719 = vmatpush1.bf16.msra.mxu0 %v1651
    %1720 = vmatprep.subr.bf16.mxu0 0
    %1721 = vmatpush1.bf16.msra.mxu0 %v1652
    %1722 = vmatprep.subr.bf16.mxu0 0
    %1723 = vmatpush1.bf16.msra.mxu0 %v1653
    %1724 = vmatprep.subr.bf16.mxu0 0
    %1725 = vmatpush1.bf16.msra.mxu0 %v1654
    %1726 = vmatprep.subr.bf16.mxu0 0
    %1727 = vmatpush1.bf16.msra.mxu0 %v1655
    %1728 = vmatprep.subr.bf16.mxu0 0
    %1729 = vmatpush1.bf16.msra.mxu0 %v1656
    %1730 = vmatprep.subr.bf16.mxu0 0
    %1731 = vmatpush1.bf16.msra.mxu0 %v1657
    %1732 = vmatprep.subr.bf16.mxu0 0
    %1733 = vmatpush1.bf16.msra.mxu0 %v1658
    %1734 = vmatprep.subr.bf16.mxu0 0
    %1735 = vmatpush1.bf16.msra.mxu0 %v1659
    %1736 = vmatprep.subr.bf16.mxu0 0
    %1737 = vmatpush1.bf16.msra.mxu0 %v1660
    %1738 = vmatprep.subr.bf16.mxu0 0
    %1739 = vmatpush1.bf16.msra.mxu0 %v1661
    %1740 = vmatprep.subr.bf16.mxu0 0
    %1741 = vmatpush1.bf16.msra.mxu0 %v1662
    %1742 = vmatprep.subr.bf16.mxu0 0
    %1743 = vmatpush1.bf16.msra.mxu0 %v1663
    %1744 = vmatprep.mubr.bf16.mxu0 %v1418
    %1745 = vmatmul.mubr.bf16.gmra.mrb[0].mxu0 %v1417
    %v1746 = vpop.f32.mrb[0].mxu0
    %v1747 = vadd.f32 %v1518, %v1746
    %v1748 = vpop.f32.mrb[0].mxu0
    %v1749 = vpop.f32.mrb[0].mxu0
    %v1750 = vadd.f32 %v1518, %v1749
    %v1751 = vpop.f32.mrb[0].mxu0
    %1752 = vmatprep.mubr.bf16.mxu0 %v1422
    %1753 = vmatmul.mubr.bf16.gmra.mrb[0].mxu0 %v1421
    %v1754 = vpop.f32.mrb[0].mxu0
    %v1755 = vadd.f32 %v1518, %v1754
    %v1756 = vpop.f32.mrb[0].mxu0
    %v1757 = vpop.f32.mrb[0].mxu0
    %v1758 = vadd.f32 %v1518, %v1757
    %v1759 = vpop.f32.mrb[0].mxu0
    %1760 = vmatprep.mubr.bf16.mxu0 %v1426
    %1761 = vmatmul.mubr.bf16.gmra.mrb[0].mxu0 %v1425
    %v1762 = vpop.f32.mrb[0].mxu0
    %v1763 = vadd.f32 %v1518, %v1762
    %v1764 = vpop.f32.mrb[0].mxu0
    %v1765 = vpop.f32.mrb[0].mxu0
    %v1766 = vadd.f32 %v1518, %v1765
    %v1767 = vpop.f32.mrb[0].mxu0
    %1768 = vmatprep.mubr.bf16.mxu0 %v1430
    %1769 = vmatmul.mubr.bf16.gmra.mrb[0].mxu0 %v1429
    %v1770 = vpop.f32.mrb[0].mxu0
    %v1771 = vadd.f32 %v1518, %v1770
    %v1772 = vpop.f32.mrb[0].mxu0
    %v1773 = vpop.f32.mrb[0].mxu0
    %v1774 = vadd.f32 %v1518, %v1773
    %v1775 = vpop.f32.mrb[0].mxu0
    %1776 = vmatprep.mubr.bf16.mxu0 %v1434
    %1777 = vmatmul.mubr.bf16.gmra.mrb[0].mxu0 %v1433
    %v1778 = vpop.f32.mrb[0].mxu0
    %v1779 = vadd.f32 %v1518, %v1778
    %v1780 = vpop.f32.mrb[0].mxu0
    %v1781 = vpop.f32.mrb[0].mxu0
    %v1782 = vadd.f32 %v1518, %v1781
    %v1783 = vpop.f32.mrb[0].mxu0
    %1784 = vmatprep.mubr.bf16.mxu0 %v1438
    %1785 = vmatmul.mubr.bf16.gmra.mrb[0].mxu0 %v1437
    %v1786 = vpop.f32.mrb[0].mxu0
    %v1787 = vadd.f32 %v1518, %v1786
    %v1788 = vpop.f32.mrb[0].mxu0
    %v1789 = vpop.f32.mrb[0].mxu0
    %v1790 = vadd.f32 %v1518, %v1789
    %v1791 = vpop.f32.mrb[0].mxu0
    %1792 = vmatprep.mubr.bf16.mxu0 %v1442
    %1793 = vmatmul.mubr.bf16.gmra.mrb[0].mxu0 %v1441
    %v1794 = vpop.f32.mrb[0].mxu0
    %v1795 = vadd.f32 %v1518, %v1794
    %v1796 = vpop.f32.mrb[0].mxu0
    %v1797 = vpop.f32.mrb[0].mxu0
    %v1798 = vadd.f32 %v1518, %v1797
    %v1799 = vpop.f32.mrb[0].mxu0
    %1800 = vmatprep.mubr.bf16.mxu0 %v1446
    %1801 = vmatmul.mubr.bf16.gmra.mrb[0].mxu0 %v1445
    %v1802 = vpop.f32.mrb[0].mxu0
    %v1803 = vadd.f32 %v1518, %v1802
    %v1804 = vpop.f32.mrb[0].mxu0
    %v1805 = vpop.f32.mrb[0].mxu0
    %v1806 = vadd.f32 %v1518, %v1805
    %v1807 = vpop.f32.mrb[0].mxu0
    %1808 = vdwg.mxu0
    %1809 = vmatprep.subr.bf16.mxu0 0
    %1810 = vmatpush1.bf16.msra.mxu0 %v1664
    %1811 = vmatprep.subr.bf16.mxu0 0
    %1812 = vmatpush1.bf16.msra.mxu0 %v1665
    %1813 = vmatprep.subr.bf16.mxu0 0
    %1814 = vmatpush1.bf16.msra.mxu0 %v1666
    %1815 = vmatprep.subr.bf16.mxu0 0
    %1816 = vmatpush1.bf16.msra.mxu0 %v1667
    %1817 = vmatprep.subr.bf16.mxu0 0
    %1818 = vmatpush1.bf16.msra.mxu0 %v1668
    %1819 = vmatprep.subr.bf16.mxu0 0
    %1820 = vmatpush1.bf16.msra.mxu0 %v1669
    %1821 = vmatprep.subr.bf16.mxu0 0
    %1822 = vmatpush1.bf16.msra.mxu0 %v1670
    %1823 = vmatprep.subr.bf16.mxu0 0
    %1824 = vmatpush1.bf16.msra.mxu0 %v1671
    %1825 = vmatprep.subr.bf16.mxu0 0
    %1826 = vmatpush1.bf16.msra.mxu0 %v1672
    %1827 = vmatprep.subr.bf16.mxu0 0
    %1828 = vmatpush1.bf16.msra.mxu0 %v1673
    %1829 = vmatprep.subr.bf16.mxu0 0
    %1830 = vmatpush1.bf16.msra.mxu0 %v1674
    %1831 = vmatprep.subr.bf16.mxu0 0
    %1832 = vmatpush1.bf16.msra.mxu0 %v1675
    %1833 = vmatprep.subr.bf16.mxu0 0
    %1834 = vmatpush1.bf16.msra.mxu0 %v1676
    %1835 = vmatprep.subr.bf16.mxu0 0
    %1836 = vmatpush1.bf16.msra.mxu0 %v1677
    %1837 = vmatprep.subr.bf16.mxu0 0
    %1838 = vmatpush1.bf16.msra.mxu0 %v1678
    %1839 = vmatprep.subr.bf16.mxu0 0
    %1840 = vmatpush1.bf16.msra.mxu0 %v1679
    %1841 = vmatprep.mubr.bf16.mxu0 %v1420
    %1842 = vmatmul.mubr.bf16.gmra.mrb[0].mxu0 %v1419
    %v1843 = vpop.f32.mrb[0].mxu0
    %v1844 = vadd.f32 %v1747, %v1843
    %v1845 = vpop.f32.mrb[0].mxu0
    %v1846 = vpop.f32.mrb[0].mxu0
    %v1847 = vadd.f32 %v1750, %v1846
    %v1848 = vpop.f32.mrb[0].mxu0
    %1849 = vmatprep.mubr.bf16.mxu0 %v1424
    %1850 = vmatmul.mubr.bf16.gmra.mrb[0].mxu0 %v1423
    %v1851 = vpop.f32.mrb[0].mxu0
    %v1852 = vadd.f32 %v1755, %v1851
    %v1853 = vpop.f32.mrb[0].mxu0
    %v1854 = vpop.f32.mrb[0].mxu0
    %v1855 = vadd.f32 %v1758, %v1854
    %v1856 = vpop.f32.mrb[0].mxu0
    %1857 = vmatprep.mubr.bf16.mxu0 %v1428
    %1858 = vmatmul.mubr.bf16.gmra.mrb[0].mxu0 %v1427
    %v1859 = vpop.f32.mrb[0].mxu0
    %v1860 = vadd.f32 %v1763, %v1859
    %v1861 = vpop.f32.mrb[0].mxu0
    %v1862 = vpop.f32.mrb[0].mxu0
    %v1863 = vadd.f32 %v1766, %v1862
    %v1864 = vpop.f32.mrb[0].mxu0
    %1865 = vmatprep.mubr.bf16.mxu0 %v1432
    %1866 = vmatmul.mubr.bf16.gmra.mrb[0].mxu0 %v1431
    %v1867 = vpop.f32.mrb[0].mxu0
    %v1868 = vadd.f32 %v1771, %v1867
    %v1869 = vpop.f32.mrb[0].mxu0
    %v1870 = vpop.f32.mrb[0].mxu0
    %v1871 = vadd.f32 %v1774, %v1870
    %v1872 = vpop.f32.mrb[0].mxu0
    %1873 = vmatprep.mubr.bf16.mxu0 %v1436
    %1874 = vmatmul.mubr.bf16.gmra.mrb[0].mxu0 %v1435
    %v1875 = vpop.f32.mrb[0].mxu0
    %v1876 = vadd.f32 %v1779, %v1875
    %v1877 = vpop.f32.mrb[0].mxu0
    %v1878 = vpop.f32.mrb[0].mxu0
    %v1879 = vadd.f32 %v1782, %v1878
    %v1880 = vpop.f32.mrb[0].mxu0
    %1881 = vmatprep.mubr.bf16.mxu0 %v1440
    %1882 = vmatmul.mubr.bf16.gmra.mrb[0].mxu0 %v1439
    %v1883 = vpop.f32.mrb[0].mxu0
    %v1884 = vadd.f32 %v1787, %v1883
    %v1885 = vpop.f32.mrb[0].mxu0
    %v1886 = vpop.f32.mrb[0].mxu0
    %v1887 = vadd.f32 %v1790, %v1886
    %v1888 = vpop.f32.mrb[0].mxu0
    %1889 = vmatprep.mubr.bf16.mxu0 %v1444
    %1890 = vmatmul.mubr.bf16.gmra.mrb[0].mxu0 %v1443
    %v1891 = vpop.f32.mrb[0].mxu0
    %v1892 = vadd.f32 %v1795, %v1891
    %v1893 = vpop.f32.mrb[0].mxu0
    %v1894 = vpop.f32.mrb[0].mxu0
    %v1895 = vadd.f32 %v1798, %v1894
    %v1896 = vpop.f32.mrb[0].mxu0
    %1897 = vmatprep.mubr.bf16.mxu0 %v1448
    %1898 = vmatmul.mubr.bf16.gmra.mrb[0].mxu0 %v1447
    %v1899 = vpop.f32.mrb[0].mxu0
    %v1900 = vadd.f32 %v1803, %v1899
    %v1901 = vpop.f32.mrb[0].mxu0
    %v1902 = vpop.f32.mrb[0].mxu0
    %v1903 = vadd.f32 %v1806, %v1902
    %v1904 = vpop.f32.mrb[0].mxu0
    %1905 = vdwg.mxu0
    %1906 = vst [vmem:[%s7] sm:$0xff] %v1844
    %1907 = vst [vmem:[%s7 + $0x8] sm:$0xff] %v1847
    %1908 = vst [vmem:[%s7 + $0x10] sm:$0xff] %v1852
    %1909 = vst [vmem:[%s7 + $0x18] sm:$0xff] %v1855
    %1910 = vst [vmem:[%s7 + $0x20] sm:$0xff] %v1860
    %1911 = vst [vmem:[%s7 + $0x28] sm:$0xff] %v1863
    %1912 = vst [vmem:[%s7 + $0x30] sm:$0xff] %v1868
    %1913 = vst [vmem:[%s7 + $0x38] sm:$0xff] %v1871
    %1914 = vst [vmem:[%s7 + $0x40] sm:$0xff] %v1876
    %1915 = vst [vmem:[%s7 + $0x48] sm:$0xff] %v1879
    %1916 = vst [vmem:[%s7 + $0x50] sm:$0xff] %v1884
    %1917 = vst [vmem:[%s7 + $0x58] sm:$0xff] %v1887
    %1918 = vst [vmem:[%s7 + $0x60] sm:$0xff] %v1892
    %1919 = vst [vmem:[%s7 + $0x68] sm:$0xff] %v1895
    %1920 = vst [vmem:[%s7 + $0x70] sm:$0xff] %v1900
    %1921 = vst [vmem:[%s7 + $0x78] sm:$0xff] %v1903
    // Predicated region
    $region26: #{classifier_forward.1} parent=1 // pred_check
      _
    $region27: #{classifier_forward.1} parent=1 // pred_check_branch
      %1923 = sbr.rel (0) target = $region29
    $region28: #{classifier_forward.1} parent=1 // pred_region
      %s1925 = ssub.s32 8192, 8192
      %1926 = vsyncadd [#allocation3], %s1925
      %s1927 = sshll.u32 [#allocation2], 4
      %s1928 = int_to_ptr.vmem [resolvable:$true] %s1927
      %1933 = dma.vmem_to_hbm [thread:$0]  %s1928, 8192, %s6, [#allocation3], 512, 512, 32
    $region29: #{classifier_forward.1} parent=1 // pred_fallthru
      _
    // Predicated region
    $region30: #{classifier_forward.1} parent=1 // pred_check
      _
    $region31: #{classifier_forward.1} parent=1 // pred_check_branch
      %1935 = sbr.rel (0) target = $region33
    $region32: #{classifier_forward.1} parent=1 // pred_region
      _
    $region33: #{classifier_forward.1} parent=1 // pred_fallthru
      _
    // Predicated region
    $region34: #{classifier_forward.1} parent=1 // pred_check
      _
    $region35: #{classifier_forward.1} parent=1 // pred_check_branch
      %1937 = sbr.rel (0) target = $region37
    $region36: #{classifier_forward.1} parent=1 // pred_region
      %1938 = dma.done [#allocation3], 8192
    $region37: #{classifier_forward.1} parent=1 // pred_fallthru
      _
    // Predicated region
    $region38: #{classifier_forward.1} parent=1 // pred_check
      _
    $region39: #{classifier_forward.1} parent=1 // pred_check_branch
      %1940 = sbr.rel (0) target = $region41
    $region40: #{classifier_forward.1} parent=1 // pred_region
      _
    $region41: #{classifier_forward.1} parent=1 // pred_fallthru
      _
    %1941 = vsyncpa [#allocation3], 1

</llo_original>
